<compile_context>
chip_gen: v7x
topology: tpu7x:2x2x1
jax: 0.10.0
libtpu: 0.0.40
codegen_flags: <defaults>
</compile_context>

<pallas_src>
import functools
import math

import jax
import jax.numpy as jnp
from jax.experimental import pallas as pl
from jax.experimental.pallas import tpu as pltpu


LSTM_HIDDEN = 128


def _round_up(x, m):
    return (x + m - 1) // m * m


# ----------------------------- Pallas kernels ------------------------------

def _mm_bias_act_kernel(x_ref, w_ref, b_ref, o_ref, *, relu):
    y = jnp.dot(x_ref[...], w_ref[...], preferred_element_type=jnp.float32)
    y = y + b_ref[...]
    if relu:
        y = jnp.maximum(y, 0.0)
    o_ref[...] = y.astype(o_ref.dtype)


def mm_bias_act(x, w, b, *, relu=True, out_dtype=jnp.float32, tm=512):
    """act(x @ w + b), row-tiled over M (parallel).  x, w in bf16; f32 accumulate."""
    M, K = x.shape
    N = w.shape[1]
    TM = min(tm, _round_up(M, 8))
    Mp = _round_up(M, TM)
    if Mp != M:
        x = jnp.pad(x, ((0, Mp - M), (0, 0)))
    out = pl.pallas_call(
        functools.partial(_mm_bias_act_kernel, relu=relu),
        grid_spec=pltpu.PrefetchScalarGridSpec(
            num_scalar_prefetch=0,
            grid=(Mp // TM,),
            in_specs=[
                pl.BlockSpec((TM, K), lambda i: (i, 0)),
                pl.BlockSpec((K, N), lambda i: (0, 0)),
                pl.BlockSpec((1, N), lambda i: (0, 0)),
            ],
            out_specs=pl.BlockSpec((TM, N), lambda i: (i, 0)),
        ),
        out_shape=jax.ShapeDtypeStruct((Mp, N), out_dtype),
        compiler_params=pltpu.CompilerParams(
            dimension_semantics=("parallel",),
            vmem_limit_bytes=32 * 1024 * 1024),
    )(x, w, b.reshape(1, N))
    return out[:M] if Mp != M else out


def _lstm_kernel(gx_ref, whh_ref, h0_ref, c0_ref,
                 hseq_ref, hfin_ref, cfin_ref, h_scr, c_scr):
    """One LSTM time-step per grid iteration (PyTorch gate order i, f, g, o).
    The x @ W_ih (+ bias) term is precomputed and arrives via gx_ref."""
    t = pl.program_id(0)

    @pl.when(t == 0)
    def _():
        h_scr[...] = h0_ref[...]
        c_scr[...] = c0_ref[...]

    H = h_scr.shape[1]
    gates = gx_ref[0] + jnp.dot(h_scr[...].astype(jnp.bfloat16), whh_ref[...],
                                preferred_element_type=jnp.float32)      # (Bp, 4H)
    i = jax.nn.sigmoid(gates[:, 0 * H:1 * H])
    f = jax.nn.sigmoid(gates[:, 1 * H:2 * H])
    g = jnp.tanh(gates[:, 2 * H:3 * H])
    o = jax.nn.sigmoid(gates[:, 3 * H:4 * H])
    c_new = f * c_scr[...] + i * g
    h_new = o * jnp.tanh(c_new)
    c_scr[...] = c_new
    h_scr[...] = h_new
    hseq_ref[0] = h_new                                                   # lane-dense H=128

    @pl.when(t == pl.num_programs(0) - 1)
    def _():
        hfin_ref[...] = h_new
        cfin_ref[...] = c_new


def lstm_core(gates_x, w_hh_T, h0, c0):
    """gates_x: (T, B, 4H) f32 = core_input @ W_ih^T + (b_ih + b_hh).
    Returns h_seq (T, B, H), h_n (B, H), c_n (B, H), all f32."""
    T, B, H4 = gates_x.shape
    H = H4 // 4
    Bp = _round_up(B, 8)                       # pad batch to sublane height
    if Bp != B:
        gates_x = jnp.pad(gates_x, ((0, 0), (0, Bp - B), (0, 0)))
        h0 = jnp.pad(h0, ((0, Bp - B), (0, 0)))
        c0 = jnp.pad(c0, ((0, Bp - B), (0, 0)))

    # TODO(synk): for very short T this could become a single grid step with an
    # unrolled lax.fori_loop over T to shave per-step grid overhead.
    grid_spec = pltpu.PrefetchScalarGridSpec(
        num_scalar_prefetch=0,
        grid=(T,),
        in_specs=[
            pl.BlockSpec((1, Bp, 4 * H), lambda t: (t, 0, 0)),
            pl.BlockSpec((H, 4 * H), lambda t: (0, 0)),
            pl.BlockSpec((Bp, H), lambda t: (0, 0)),
            pl.BlockSpec((Bp, H), lambda t: (0, 0)),
        ],
        out_specs=[
            pl.BlockSpec((1, Bp, H), lambda t: (t, 0, 0)),
            pl.BlockSpec((Bp, H), lambda t: (0, 0)),
            pl.BlockSpec((Bp, H), lambda t: (0, 0)),
        ],
        scratch_shapes=[pltpu.VMEM((Bp, H), jnp.float32),
                        pltpu.VMEM((Bp, H), jnp.float32)],
    )
    h_seq, h_n, c_n = pl.pallas_call(
        _lstm_kernel,
        grid_spec=grid_spec,
        out_shape=(jax.ShapeDtypeStruct((T, Bp, H), jnp.float32),
                   jax.ShapeDtypeStruct((Bp, H), jnp.float32),
                   jax.ShapeDtypeStruct((Bp, H), jnp.float32)),
        compiler_params=pltpu.CompilerParams(
            dimension_semantics=("arbitrary",)),
    )(gates_x, w_hh_T, h0, c0)
    if Bp != B:
        h_seq, h_n, c_n = h_seq[:, :B], h_n[:B], c_n[:B]
    return h_seq, h_n, c_n


def _qhead_kernel(a_in_ref, v_in_ref, wa_ref, ba_ref, wv_ref, bv_ref, q_ref,
                  *, num_actions):
    """Fused final advantage/value linears + dueling combine.
    W/b columns >= num_actions (resp. >= 1) are zero, so lane-sums recover the
    advantage mean and the scalar value without masks."""
    a = jnp.dot(a_in_ref[...], wa_ref[...], preferred_element_type=jnp.float32) + ba_ref[...]
    v = jnp.dot(v_in_ref[...], wv_ref[...], preferred_element_type=jnp.float32) + bv_ref[...]
    a_mean = jnp.sum(a, axis=-1, keepdims=True) * (1.0 / num_actions)
    v0 = jnp.sum(v, axis=-1, keepdims=True)
    q_ref[...] = (v0 + (a - a_mean)).astype(q_ref.dtype)


def q_head(a_in, v_in, wa, ba, wv, bv, num_actions, tm=512):
    M, K = a_in.shape
    Np = wa.shape[1]                           # 128 (lane-padded)
    TM = min(tm, _round_up(M, 8))
    Mp = _round_up(M, TM)
    if Mp != M:
        a_in = jnp.pad(a_in, ((0, Mp - M), (0, 0)))
        v_in = jnp.pad(v_in, ((0, Mp - M), (0, 0)))
    q = pl.pallas_call(
        functools.partial(_qhead_kernel, num_actions=num_actions),
        grid_spec=pltpu.PrefetchScalarGridSpec(
            num_scalar_prefetch=0,
            grid=(Mp // TM,),
            in_specs=[
                pl.BlockSpec((TM, K), lambda i: (i, 0)),
                pl.BlockSpec((TM, K), lambda i: (i, 0)),
                pl.BlockSpec((K, Np), lambda i: (0, 0)),
                pl.BlockSpec((1, Np), lambda i: (0, 0)),
                pl.BlockSpec((K, Np), lambda i: (0, 0)),
                pl.BlockSpec((1, Np), lambda i: (0, 0)),
            ],
            out_specs=pl.BlockSpec((TM, Np), lambda i: (i, 0)),
        ),
        out_shape=jax.ShapeDtypeStruct((Mp, Np), jnp.float32),
        compiler_params=pltpu.CompilerParams(
            dimension_semantics=("parallel",),
            vmem_limit_bytes=32 * 1024 * 1024),
    )(a_in, v_in, wa, ba.reshape(1, Np), wv, bv.reshape(1, Np))
    return q[:M, :num_actions]


# ------------------------------- JAX glue ----------------------------------

def r2d2_mlp_forward(params, s_t, a_tm1, r_t, hidden_s=None, *, num_actions):
    """s_t: [T, B, D]; a_tm1: [T, B] int; r_t: [T, B] float;
    hidden_s: optional (h0, c0), each [1, B, 128].
    Returns (q_values [T, B, A], (h_n, c_n) each [1, B, 128])."""
    T, B, D = s_t.shape
    A = num_actions
    H = LSTM_HIDDEN
    TB = T * B
    bf16 = jnp.bfloat16

    # Body MLP.
    x = s_t.reshape(TB, D).astype(bf16)
    x = mm_bias_act(x, params["w_b1"], params["b_b1"], relu=True, out_dtype=bf16)   # (TB, 128)
    x = mm_bias_act(x, params["w_b2"], params["b_b2"], relu=True, out_dtype=bf16)   # (TB, 256)

    # Core input = [body, reward, one_hot(a_tm1)]  (matches the PyTorch cat order).
    one_hot = jax.nn.one_hot(a_tm1.reshape(TB), A, dtype=bf16)
    reward = r_t.reshape(TB, 1).astype(bf16)
    core_in = jnp.concatenate([x, reward, one_hot], axis=-1)                         # (TB, 256+1+A)

    # Hoisted input-gate matmul (was in the sequential LSTM loop).
    gates_x = mm_bias_act(core_in, params["w_ih"], params["b_lstm"],
                          relu=False, out_dtype=jnp.float32)                         # (TB, 4H)
    gates_x = gates_x.reshape(T, B, 4 * H)

    if hidden_s is None:
        h0 = jnp.zeros((B, H), jnp.float32)
        c0 = jnp.zeros((B, H), jnp.float32)
    else:
        h0 = hidden_s[0][0].astype(jnp.float32)
        c0 = hidden_s[1][0].astype(jnp.float32)

    h_seq, h_n, c_n = lstm_core(gates_x, params["w_hh"], h0, c0)                     # (T, B, H)
    xl = h_seq.reshape(TB, H).astype(bf16)

    # Advantage stream (skip concatenations with the LSTM output).
    a1 = mm_bias_act(xl, params["w_a1"], params["b_a1"], relu=True, out_dtype=bf16)
    a2 = mm_bias_act(jnp.concatenate([a1, xl], -1), params["w_a2"], params["b_a2"],
                     relu=True, out_dtype=bf16)
    a3 = mm_bias_act(jnp.concatenate([a2, xl], -1), params["w_a3"], params["b_a3"],
                     relu=True, out_dtype=bf16)
    a_in = jnp.concatenate([a3, xl], -1)

    # Value stream.
    v1 = mm_bias_act(xl, params["w_v1"], params["b_v1"], relu=True, out_dtype=bf16)
    v2 = mm_bias_act(jnp.concatenate([v1, xl], -1), params["w_v2"], params["b_v2"],
                     relu=True, out_dtype=bf16)
    v3 = mm_bias_act(jnp.concatenate([v2, xl], -1), params["w_v3"], params["b_v3"],
                     relu=True, out_dtype=bf16)
    v_in = jnp.concatenate([v3, xl], -1)

    # Fused final linears + dueling combine (lane-padded to 128, sliced to A).
    q = q_head(a_in, v_in, params["w_a4"], params["b_a4"],
               params["w_v4"], params["b_v4"], A)                                    # (TB, A)
    q = q.reshape(T, B, A)
    return q, (h_n[None], c_n[None])                                                 # each (1, B, 128)


def init_params(key, input_shape, num_actions, hidden=LSTM_HIDDEN):
    """PyTorch-style uniform(-1/sqrt(fan_in)) init; weights stored transposed, bf16 for MXU."""
    a_pad = _round_up(max(num_actions, 1), 128)
    core_in = 256 + num_actions + 1
    keys = iter(jax.random.split(key, 32))

    def linear(fan_in, fan_out, pad_to=None):
        bound = 1.0 / math.sqrt(fan_in)
        w = jax.random.uniform(next(keys), (fan_in, fan_out), jnp.float32, -bound, bound)
        b = jax.random.uniform(next(keys), (fan_out,), jnp.float32, -bound, bound)
        if pad_to is not None and pad_to > fan_out:
            w = jnp.pad(w, ((0, 0), (0, pad_to - fan_out)))
            b = jnp.pad(b, ((0, pad_to - fan_out),))
        return w.astype(jnp.bfloat16), b.astype(jnp.float32)

    p = {}
    p["w_b1"], p["b_b1"] = linear(input_shape, 128)
    p["w_b2"], p["b_b2"] = linear(128, 256)

    # LSTM (PyTorch layout: W_ih (4H, in), W_hh (4H, H); gate order i, f, g, o).
    bound = 1.0 / math.sqrt(hidden)
    w_ih = jax.random.uniform(next(keys), (4 * hidden, core_in), jnp.float32, -bound, bound)
    w_hh = jax.random.uniform(next(keys), (4 * hidden, hidden), jnp.float32, -bound, bound)
    b_ih = jax.random.uniform(next(keys), (4 * hidden,), jnp.float32, -bound, bound)
    b_hh = jax.random.uniform(next(keys), (4 * hidden,), jnp.float32, -bound, bound)
    p["w_ih"] = w_ih.T.astype(jnp.bfloat16)             # (core_in, 4H)
    p["w_hh"] = w_hh.T.astype(jnp.bfloat16)             # (H, 4H)
    p["b_lstm"] = (b_ih + b_hh).astype(jnp.float32)     # folded into the hoisted matmul

    p["w_a1"], p["b_a1"] = linear(hidden, hidden)
    p["w_a2"], p["b_a2"] = linear(2 * hidden, 128)
    p["w_a3"], p["b_a3"] = linear(2 * hidden, 128)
    p["w_a4"], p["b_a4"] = linear(2 * hidden, num_actions, pad_to=a_pad)  # lane-padded
    p["w_v1"], p["b_v1"] = linear(hidden, hidden)
    p["w_v2"], p["b_v2"] = linear(2 * hidden, 128)
    p["w_v3"], p["b_v3"] = linear(2 * hidden, 128)
    p["w_v4"], p["b_v4"] = linear(2 * hidden, 1, pad_to=a_pad)            # lane-padded
    return p


if __name__ == "__main__":
    key = jax.random.PRNGKey(0)
    T, B, D, A = 8, 2, 32, 6

    k1, k2, k3, k4 = jax.random.split(key, 4)
    s_t = jax.random.normal(k1, (T, B, D), jnp.float32)
    a_tm1 = jax.random.randint(k2, (T, B), 0, A, dtype=jnp.int32)
    r_t = jax.random.normal(k3, (T, B), jnp.float32)
    params = init_params(k4, D, A)

    fwd = jax.jit(functools.partial(r2d2_mlp_forward, num_actions=A))

    # Fresh episode: hidden_s=None -> zeros (matches get_initial_hidden_state).
    q, (h_n, c_n) = fwd(params, s_t, a_tm1, r_t, None)
    jax.block_until_ready((q, h_n, c_n))
    assert q.shape == (T, B, A)
    assert h_n.shape == (1, B, LSTM_HIDDEN) and c_n.shape == (1, B, LSTM_HIDDEN)

    # Stored-state path: thread the returned hidden state back in.
    q2, (h_n2, c_n2) = fwd(params, s_t, a_tm1, r_t, (h_n, c_n))
    jax.block_until_ready((q2, h_n2, c_n2))
    assert q2.shape == (T, B, A)
    assert bool(jnp.all(jnp.isfinite(q))) and bool(jnp.all(jnp.isfinite(q2)))

    print("KERNEL_OK")
</pallas_src>

<mosaic_0001>
module attributes {stable_mosaic.version = 11 : i64} {
  func.func @_mm_bias_act_kernel(%arg0: i32, %arg1: memref<16x32xbf16, #tpu.memory_space<vmem>>, %arg2: memref<32x128xbf16, #tpu.memory_space<vmem>>, %arg3: memref<1x128xf32, #tpu.memory_space<vmem>>, %arg4: memref<16x128xbf16, #tpu.memory_space<vmem>>) attributes {dimension_semantics = [#tpu.dimension_semantics<parallel>], iteration_bounds = array<i64: 1>, scalar_prefetch = 0 : i64, scratch_operands = 0 : i64, tpu.core_type = #tpu.core_type<tc>, window_params = [{transform_indices = @transform_0, window_bounds = array<i64: 16, 32>}, {pipeline_mode = #tpu.pipeline_mode<synchronous>, transform_indices = @transform_1, window_bounds = array<i64: 32, 128>}, {pipeline_mode = #tpu.pipeline_mode<synchronous>, transform_indices = @transform_2, window_bounds = array<i64: 1, 128>}, {transform_indices = @transform_3, window_bounds = array<i64: 16, 128>}]} {
    %c0 = arith.constant 0 : index
    %c0_0 = arith.constant 0 : index
    %0 = vector.load %arg1[%c0, %c0_0] : memref<16x32xbf16, #tpu.memory_space<vmem>>, vector<16x32xbf16>
    %c0_1 = arith.constant 0 : index
    %c0_2 = arith.constant 0 : index
    %1 = vector.load %arg2[%c0_1, %c0_2] : memref<32x128xbf16, #tpu.memory_space<vmem>>, vector<32x128xbf16>
    %cst = arith.constant dense<0.000000e+00> : vector<16x128xf32>
    %2 = tpu.matmul %0, %1, %cst {dimension_numbers = #tpu.dot_dimension_numbers<[1], [0], [0], [1], [0, 0, 1, 1], [], []>} : vector<16x32xbf16>, vector<32x128xbf16>, vector<16x128xf32> -> vector<16x128xf32>
    %c0_3 = arith.constant 0 : index
    %c0_4 = arith.constant 0 : index
    %3 = vector.load %arg3[%c0_3, %c0_4] : memref<1x128xf32, #tpu.memory_space<vmem>>, vector<1x128xf32>
    %4 = vector.broadcast %3 : vector<1x128xf32> to vector<16x128xf32>
    %5 = arith.addf %2, %4 : vector<16x128xf32>
    %cst_5 = arith.constant 0.000000e+00 : f32
    %6 = vector.broadcast %cst_5 : f32 to vector<16x128xf32>
    %7 = arith.maximumf %5, %6 : vector<16x128xf32>
    %8 = arith.truncf %7 : vector<16x128xf32> to vector<16x128xbf16>
    %c0_6 = arith.constant 0 : index
    %c0_7 = arith.constant 0 : index
    %9 = vector.load %arg4[%c0_6, %c0_7] : memref<16x128xbf16, #tpu.memory_space<vmem>>, vector<16x128xbf16>
    tpu.vector_store %arg4[%c0_6, %c0_7], %8 {strides = array<i32>} : memref<16x128xbf16, #tpu.memory_space<vmem>>, vector<16x128xbf16>,
    return
  }
  func.func @transform_0(%arg0: i32) -> (i32, i32) {
    %c0_i32 = arith.constant 0 : i32
    %c0_i32_0 = arith.constant 0 : i32
    return %arg0, %c0_i32 : i32, i32
  }
  func.func @transform_1(%arg0: i32) -> (i32, i32) {
    %c0_i32 = arith.constant 0 : i32
    %c0_i32_0 = arith.constant 0 : i32
    %c0_i32_1 = arith.constant 0 : i32
    return %c0_i32, %c0_i32_0 : i32, i32
  }
  func.func @transform_2(%arg0: i32) -> (i32, i32) {
    %c0_i32 = arith.constant 0 : i32
    %c0_i32_0 = arith.constant 0 : i32
    %c0_i32_1 = arith.constant 0 : i32
    return %c0_i32, %c0_i32_0 : i32, i32
  }
  func.func @transform_3(%arg0: i32) -> (i32, i32) {
    %c0_i32 = arith.constant 0 : i32
    %c0_i32_0 = arith.constant 0 : i32
    return %arg0, %c0_i32 : i32, i32
  }
}

module attributes {stable_mosaic.version = 11 : i64} {
  func.func @_mm_bias_act_kernel(%arg0: i32, %arg1: memref<16x128xbf16, #tpu.memory_space<vmem>>, %arg2: memref<128x256xbf16, #tpu.memory_space<vmem>>, %arg3: memref<1x256xf32, #tpu.memory_space<vmem>>, %arg4: memref<16x256xbf16, #tpu.memory_space<vmem>>) attributes {dimension_semantics = [#tpu.dimension_semantics<parallel>], iteration_bounds = array<i64: 1>, scalar_prefetch = 0 : i64, scratch_operands = 0 : i64, tpu.core_type = #tpu.core_type<tc>, window_params = [{transform_indices = @transform_0, window_bounds = array<i64: 16, 128>}, {pipeline_mode = #tpu.pipeline_mode<synchronous>, transform_indices = @transform_1, window_bounds = array<i64: 128, 256>}, {pipeline_mode = #tpu.pipeline_mode<synchronous>, transform_indices = @transform_2, window_bounds = array<i64: 1, 256>}, {transform_indices = @transform_3, window_bounds = array<i64: 16, 256>}]} {
    %c0 = arith.constant 0 : index
    %c0_0 = arith.constant 0 : index
    %0 = vector.load %arg1[%c0, %c0_0] : memref<16x128xbf16, #tpu.memory_space<vmem>>, vector<16x128xbf16>
    %c0_1 = arith.constant 0 : index
    %c0_2 = arith.constant 0 : index
    %1 = vector.load %arg2[%c0_1, %c0_2] : memref<128x256xbf16, #tpu.memory_space<vmem>>, vector<128x256xbf16>
    %cst = arith.constant dense<0.000000e+00> : vector<16x256xf32>
    %2 = tpu.matmul %0, %1, %cst {dimension_numbers = #tpu.dot_dimension_numbers<[1], [0], [0], [1], [0, 0, 1, 1], [], []>} : vector<16x128xbf16>, vector<128x256xbf16>, vector<16x256xf32> -> vector<16x256xf32>
    %c0_3 = arith.constant 0 : index
    %c0_4 = arith.constant 0 : index
    %3 = vector.load %arg3[%c0_3, %c0_4] : memref<1x256xf32, #tpu.memory_space<vmem>>, vector<1x256xf32>
    %4 = vector.broadcast %3 : vector<1x256xf32> to vector<16x256xf32>
    %5 = arith.addf %2, %4 : vector<16x256xf32>
    %cst_5 = arith.constant 0.000000e+00 : f32
    %6 = vector.broadcast %cst_5 : f32 to vector<16x256xf32>
    %7 = arith.maximumf %5, %6 : vector<16x256xf32>
    %8 = arith.truncf %7 : vector<16x256xf32> to vector<16x256xbf16>
    %c0_6 = arith.constant 0 : index
    %c0_7 = arith.constant 0 : index
    %9 = vector.load %arg4[%c0_6, %c0_7] : memref<16x256xbf16, #tpu.memory_space<vmem>>, vector<16x256xbf16>
    tpu.vector_store %arg4[%c0_6, %c0_7], %8 {strides = array<i32>} : memref<16x256xbf16, #tpu.memory_space<vmem>>, vector<16x256xbf16>,
    return
  }
  func.func @transform_0(%arg0: i32) -> (i32, i32) {
    %c0_i32 = arith.constant 0 : i32
    %c0_i32_0 = arith.constant 0 : i32
    return %arg0, %c0_i32 : i32, i32
  }
  func.func @transform_1(%arg0: i32) -> (i32, i32) {
    %c0_i32 = arith.constant 0 : i32
    %c0_i32_0 = arith.constant 0 : i32
    %c0_i32_1 = arith.constant 0 : i32
    return %c0_i32, %c0_i32_0 : i32, i32
  }
  func.func @transform_2(%arg0: i32) -> (i32, i32) {
    %c0_i32 = arith.constant 0 : i32
    %c0_i32_0 = arith.constant 0 : i32
    %c0_i32_1 = arith.constant 0 : i32
    return %c0_i32, %c0_i32_0 : i32, i32
  }
  func.func @transform_3(%arg0: i32) -> (i32, i32) {
    %c0_i32 = arith.constant 0 : i32
    %c0_i32_0 = arith.constant 0 : i32
    return %arg0, %c0_i32 : i32, i32
  }
}

module attributes {stable_mosaic.version = 11 : i64} {
  func.func @_mm_bias_act_kernel(%arg0: i32, %arg1: memref<16x263xbf16, #tpu.memory_space<vmem>>, %arg2: memref<263x512xbf16, #tpu.memory_space<vmem>>, %arg3: memref<1x512xf32, #tpu.memory_space<vmem>>, %arg4: memref<16x512xf32, #tpu.memory_space<vmem>>) attributes {dimension_semantics = [#tpu.dimension_semantics<parallel>], iteration_bounds = array<i64: 1>, scalar_prefetch = 0 : i64, scratch_operands = 0 : i64, tpu.core_type = #tpu.core_type<tc>, window_params = [{transform_indices = @transform_0, window_bounds = array<i64: 16, 263>}, {pipeline_mode = #tpu.pipeline_mode<synchronous>, transform_indices = @transform_1, window_bounds = array<i64: 263, 512>}, {pipeline_mode = #tpu.pipeline_mode<synchronous>, transform_indices = @transform_2, window_bounds = array<i64: 1, 512>}, {transform_indices = @transform_3, window_bounds = array<i64: 16, 512>}]} {
    %c0 = arith.constant 0 : index
    %c0_0 = arith.constant 0 : index
    %0 = vector.load %arg1[%c0, %c0_0] : memref<16x263xbf16, #tpu.memory_space<vmem>>, vector<16x263xbf16>
    %c0_1 = arith.constant 0 : index
    %c0_2 = arith.constant 0 : index
    %1 = vector.load %arg2[%c0_1, %c0_2] : memref<263x512xbf16, #tpu.memory_space<vmem>>, vector<263x512xbf16>
    %cst = arith.constant dense<0.000000e+00> : vector<16x512xf32>
    %2 = tpu.matmul %0, %1, %cst {dimension_numbers = #tpu.dot_dimension_numbers<[1], [0], [0], [1], [0, 0, 1, 1], [], []>} : vector<16x263xbf16>, vector<263x512xbf16>, vector<16x512xf32> -> vector<16x512xf32>
    %c0_3 = arith.constant 0 : index
    %c0_4 = arith.constant 0 : index
    %3 = vector.load %arg3[%c0_3, %c0_4] : memref<1x512xf32, #tpu.memory_space<vmem>>, vector<1x512xf32>
    %4 = vector.broadcast %3 : vector<1x512xf32> to vector<16x512xf32>
    %5 = arith.addf %2, %4 : vector<16x512xf32>
    %c0_5 = arith.constant 0 : index
    %c0_6 = arith.constant 0 : index
    %6 = vector.load %arg4[%c0_5, %c0_6] : memref<16x512xf32, #tpu.memory_space<vmem>>, vector<16x512xf32>
    tpu.vector_store %arg4[%c0_5, %c0_6], %5 {strides = array<i32>} : memref<16x512xf32, #tpu.memory_space<vmem>>, vector<16x512xf32>,
    return
  }
  func.func @transform_0(%arg0: i32) -> (i32, i32) {
    %c0_i32 = arith.constant 0 : i32
    %c0_i32_0 = arith.constant 0 : i32
    return %arg0, %c0_i32 : i32, i32
  }
  func.func @transform_1(%arg0: i32) -> (i32, i32) {
    %c0_i32 = arith.constant 0 : i32
    %c0_i32_0 = arith.constant 0 : i32
    %c0_i32_1 = arith.constant 0 : i32
    return %c0_i32, %c0_i32_0 : i32, i32
  }
  func.func @transform_2(%arg0: i32) -> (i32, i32) {
    %c0_i32 = arith.constant 0 : i32
    %c0_i32_0 = arith.constant 0 : i32
    %c0_i32_1 = arith.constant 0 : i32
    return %c0_i32, %c0_i32_0 : i32, i32
  }
  func.func @transform_3(%arg0: i32) -> (i32, i32) {
    %c0_i32 = arith.constant 0 : i32
    %c0_i32_0 = arith.constant 0 : i32
    return %arg0, %c0_i32 : i32, i32
  }
}

module attributes {stable_mosaic.version = 11 : i64} {
  func.func @_lstm_kernel(%arg0: i32, %arg1: memref<1x8x512xf32, #tpu.memory_space<vmem>>, %arg2: memref<128x512xbf16, #tpu.memory_space<vmem>>, %arg3: memref<8x128xf32, #tpu.memory_space<vmem>>, %arg4: memref<8x128xf32, #tpu.memory_space<vmem>>, %arg5: memref<1x8x128xf32, #tpu.memory_space<vmem>>, %arg6: memref<8x128xf32, #tpu.memory_space<vmem>>, %arg7: memref<8x128xf32, #tpu.memory_space<vmem>>, %arg8: memref<8x128xf32, #tpu.memory_space<vmem>>, %arg9: memref<8x128xf32, #tpu.memory_space<vmem>>) attributes {dimension_semantics = [#tpu.dimension_semantics<arbitrary>], iteration_bounds = array<i64: 8>, scalar_prefetch = 0 : i64, scratch_operands = 2 : i64, tpu.core_type = #tpu.core_type<tc>, window_params = [{transform_indices = @transform_0, window_bounds = array<i64: 1, 8, 512>}, {pipeline_mode = #tpu.pipeline_mode<synchronous>, transform_indices = @transform_1, window_bounds = array<i64: 128, 512>}, {pipeline_mode = #tpu.pipeline_mode<synchronous>, transform_indices = @transform_2, window_bounds = array<i64: 8, 128>}, {pipeline_mode = #tpu.pipeline_mode<synchronous>, transform_indices = @transform_3, window_bounds = array<i64: 8, 128>}, {transform_indices = @transform_4, window_bounds = array<i64: 1, 8, 128>}, {pipeline_mode = #tpu.pipeline_mode<synchronous>, transform_indices = @transform_5, window_bounds = array<i64: 8, 128>}, {pipeline_mode = #tpu.pipeline_mode<synchronous>, transform_indices = @transform_6, window_bounds = array<i64: 8, 128>}]} {
    %c0_i32 = arith.constant 0 : i32
    %0 = arith.cmpi eq, %arg0, %c0_i32 : i32
    %1 = arith.extui %0 : i1 to i32
    %c0_i32_0 = arith.constant 0 : i32
    %2 = arith.cmpi ne, %1, %c0_i32_0 : i32
    scf.if %2 {
      %c0_20 = arith.constant 0 : index
      %c0_21 = arith.constant 0 : index
      %44 = vector.load %arg3[%c0_20, %c0_21] : memref<8x128xf32, #tpu.memory_space<vmem>>, vector<8x128xf32>
      %c0_22 = arith.constant 0 : index
      %c0_23 = arith.constant 0 : index
      %45 = vector.load %arg8[%c0_22, %c0_23] : memref<8x128xf32, #tpu.memory_space<vmem>>, vector<8x128xf32>
      tpu.vector_store %arg8[%c0_22, %c0_23], %44 {strides = array<i32>} : memref<8x128xf32, #tpu.memory_space<vmem>>, vector<8x128xf32>,
      %c0_24 = arith.constant 0 : index
      %c0_25 = arith.constant 0 : index
      %46 = vector.load %arg4[%c0_24, %c0_25] : memref<8x128xf32, #tpu.memory_space<vmem>>, vector<8x128xf32>
      %c0_26 = arith.constant 0 : index
      %c0_27 = arith.constant 0 : index
      %47 = vector.load %arg9[%c0_26, %c0_27] : memref<8x128xf32, #tpu.memory_space<vmem>>, vector<8x128xf32>
      tpu.vector_store %arg9[%c0_26, %c0_27], %46 {strides = array<i32>} : memref<8x128xf32, #tpu.memory_space<vmem>>, vector<8x128xf32>,
    } else {
    }
    %c0 = arith.constant 0 : index
    %c0_1 = arith.constant 0 : index
    %c0_2 = arith.constant 0 : index
    %3 = vector.load %arg1[%c0, %c0_1, %c0_2] : memref<1x8x512xf32, #tpu.memory_space<vmem>>, vector<1x8x512xf32>
    %4 = vector.shape_cast %3 : vector<1x8x512xf32> to vector<8x512xf32>
    %c0_3 = arith.constant 0 : index
    %c0_4 = arith.constant 0 : index
    %5 = vector.load %arg8[%c0_3, %c0_4] : memref<8x128xf32, #tpu.memory_space<vmem>>, vector<8x128xf32>
    %6 = arith.truncf %5 : vector<8x128xf32> to vector<8x128xbf16>
    %c0_5 = arith.constant 0 : index
    %c0_6 = arith.constant 0 : index
    %7 = vector.load %arg2[%c0_5, %c0_6] : memref<128x512xbf16, #tpu.memory_space<vmem>>, vector<128x512xbf16>
    %cst = arith.constant dense<0.000000e+00> : vector<8x512xf32>
    %8 = tpu.matmul %6, %7, %cst {dimension_numbers = #tpu.dot_dimension_numbers<[1], [0], [0], [1], [0, 0, 1, 1], [], []>} : vector<8x128xbf16>, vector<128x512xbf16>, vector<8x512xf32> -> vector<8x512xf32>
    %9 = arith.addf %4, %8 : vector<8x512xf32>
    %10 = vector.extract_strided_slice %9 {offsets = [0, 0], sizes = [8, 128], strides = [1, 1]} : vector<8x512xf32> to vector<8x128xf32>
    %11 = arith.negf %10 : vector<8x128xf32>
    %12 = math.exp %11 : vector<8x128xf32>
    %cst_7 = arith.constant 1.000000e+00 : f32
    %13 = vector.broadcast %cst_7 : f32 to vector<8x128xf32>
    %14 = arith.addf %13, %12 : vector<8x128xf32>
    %15 = arith.divf %13, %14 : vector<8x128xf32>
    %16 = vector.extract_strided_slice %9 {offsets = [0, 128], sizes = [8, 128], strides = [1, 1]} : vector<8x512xf32> to vector<8x128xf32>
    %17 = arith.negf %16 : vector<8x128xf32>
    %18 = math.exp %17 : vector<8x128xf32>
    %cst_8 = arith.constant 1.000000e+00 : f32
    %19 = vector.broadcast %cst_8 : f32 to vector<8x128xf32>
    %20 = arith.addf %19, %18 : vector<8x128xf32>
    %21 = arith.divf %19, %20 : vector<8x128xf32>
    %22 = vector.extract_strided_slice %9 {offsets = [0, 256], sizes = [8, 128], strides = [1, 1]} : vector<8x512xf32> to vector<8x128xf32>
    %23 = math.tanh %22 : vector<8x128xf32>
    %24 = vector.extract_strided_slice %9 {offsets = [0, 384], sizes = [8, 128], strides = [1, 1]} : vector<8x512xf32> to vector<8x128xf32>
    %25 = arith.negf %24 : vector<8x128xf32>
    %26 = math.exp %25 : vector<8x128xf32>
    %cst_9 = arith.constant 1.000000e+00 : f32
    %27 = vector.broadcast %cst_9 : f32 to vector<8x128xf32>
    %28 = arith.addf %27, %26 : vector<8x128xf32>
    %29 = arith.divf %27, %28 : vector<8x128xf32>
    %c0_10 = arith.constant 0 : index
    %c0_11 = arith.constant 0 : index
    %30 = vector.load %arg9[%c0_10, %c0_11] : memref<8x128xf32, #tpu.memory_space<vmem>>, vector<8x128xf32>
    %31 = arith.mulf %21, %30 : vector<8x128xf32>
    %32 = arith.mulf %15, %23 : vector<8x128xf32>
    %33 = arith.addf %31, %32 : vector<8x128xf32>
    %34 = math.tanh %33 : vector<8x128xf32>
    %35 = arith.mulf %29, %34 : vector<8x128xf32>
    %c0_12 = arith.constant 0 : index
    %c0_13 = arith.constant 0 : index
    %36 = vector.load %arg9[%c0_12, %c0_13] : memref<8x128xf32, #tpu.memory_space<vmem>>, vector<8x128xf32>
    tpu.vector_store %arg9[%c0_12, %c0_13], %33 {strides = array<i32>} : memref<8x128xf32, #tpu.memory_space<vmem>>, vector<8x128xf32>,
    %c0_14 = arith.constant 0 : index
    %c0_15 = arith.constant 0 : index
    %37 = vector.load %arg8[%c0_14, %c0_15] : memref<8x128xf32, #tpu.memory_space<vmem>>, vector<8x128xf32>
    tpu.vector_store %arg8[%c0_14, %c0_15], %35 {strides = array<i32>} : memref<8x128xf32, #tpu.memory_space<vmem>>, vector<8x128xf32>,
    %c0_16 = arith.constant 0 : index
    %c0_17 = arith.constant 0 : index
    %c0_18 = arith.constant 0 : index
    %38 = vector.load %arg5[%c0_16, %c0_17, %c0_18] : memref<1x8x128xf32, #tpu.memory_space<vmem>>, vector<1x8x128xf32>
    %39 = vector.shape_cast %38 : vector<1x8x128xf32> to vector<8x128xf32>
    %40 = vector.shape_cast %35 : vector<8x128xf32> to vector<1x8x128xf32>
    tpu.vector_store %arg5[%c0_16, %c0_17, %c0_18], %40 {strides = array<i32>} : memref<1x8x128xf32, #tpu.memory_space<vmem>>, vector<1x8x128xf32>,
    %c7_i32 = arith.constant 7 : i32
    %41 = arith.cmpi eq, %arg0, %c7_i32 : i32
    %42 = arith.extui %41 : i1 to i32
    %c0_i32_19 = arith.constant 0 : i32
    %43 = arith.cmpi ne, %42, %c0_i32_19 : i32
    scf.if %43 {
      %c0_20 = arith.constant 0 : index
      %c0_21 = arith.constant 0 : index
      %44 = vector.load %arg6[%c0_20, %c0_21] : memref<8x128xf32, #tpu.memory_space<vmem>>, vector<8x128xf32>
      tpu.vector_store %arg6[%c0_20, %c0_21], %35 {strides = array<i32>} : memref<8x128xf32, #tpu.memory_space<vmem>>, vector<8x128xf32>,
      %c0_22 = arith.constant 0 : index
      %c0_23 = arith.constant 0 : index
      %45 = vector.load %arg7[%c0_22, %c0_23] : memref<8x128xf32, #tpu.memory_space<vmem>>, vector<8x128xf32>
      tpu.vector_store %arg7[%c0_22, %c0_23], %33 {strides = array<i32>} : memref<8x128xf32, #tpu.memory_space<vmem>>, vector<8x128xf32>,
    } else {
    }
    return
  }
  func.func @transform_0(%arg0: i32) -> (i32, i32, i32) {
    %c0_i32 = arith.constant 0 : i32
    %c0_i32_0 = arith.constant 0 : i32
    %c0_i32_1 = arith.constant 0 : i32
    return %arg0, %c0_i32, %c0_i32_0 : i32, i32, i32
  }
  func.func @transform_1(%arg0: i32) -> (i32, i32) {
    %c0_i32 = arith.constant 0 : i32
    %c0_i32_0 = arith.constant 0 : i32
    %c0_i32_1 = arith.constant 0 : i32
    return %c0_i32, %c0_i32_0 : i32, i32
  }
  func.func @transform_2(%arg0: i32) -> (i32, i32) {
    %c0_i32 = arith.constant 0 : i32
    %c0_i32_0 = arith.constant 0 : i32
    %c0_i32_1 = arith.constant 0 : i32
    return %c0_i32, %c0_i32_0 : i32, i32
  }
  func.func @transform_3(%arg0: i32) -> (i32, i32) {
    %c0_i32 = arith.constant 0 : i32
    %c0_i32_0 = arith.constant 0 : i32
    %c0_i32_1 = arith.constant 0 : i32
    return %c0_i32, %c0_i32_0 : i32, i32
  }
  func.func @transform_4(%arg0: i32) -> (i32, i32, i32) {
    %c0_i32 = arith.constant 0 : i32
    %c0_i32_0 = arith.constant 0 : i32
    %c0_i32_1 = arith.constant 0 : i32
    return %arg0, %c0_i32, %c0_i32_0 : i32, i32, i32
  }
  func.func @transform_5(%arg0: i32) -> (i32, i32) {
    %c0_i32 = arith.constant 0 : i32
    %c0_i32_0 = arith.constant 0 : i32
    %c0_i32_1 = arith.constant 0 : i32
    return %c0_i32, %c0_i32_0 : i32, i32
  }
  func.func @transform_6(%arg0: i32) -> (i32, i32) {
    %c0_i32 = arith.constant 0 : i32
    %c0_i32_0 = arith.constant 0 : i32
    %c0_i32_1 = arith.constant 0 : i32
    return %c0_i32, %c0_i32_0 : i32, i32
  }
}

module attributes {stable_mosaic.version = 11 : i64} {
  func.func @_mm_bias_act_kernel(%arg0: i32, %arg1: memref<16x128xbf16, #tpu.memory_space<vmem>>, %arg2: memref<128x128xbf16, #tpu.memory_space<vmem>>, %arg3: memref<1x128xf32, #tpu.memory_space<vmem>>, %arg4: memref<16x128xbf16, #tpu.memory_space<vmem>>) attributes {dimension_semantics = [#tpu.dimension_semantics<parallel>], iteration_bounds = array<i64: 1>, scalar_prefetch = 0 : i64, scratch_operands = 0 : i64, tpu.core_type = #tpu.core_type<tc>, window_params = [{transform_indices = @transform_0, window_bounds = array<i64: 16, 128>}, {pipeline_mode = #tpu.pipeline_mode<synchronous>, transform_indices = @transform_1, window_bounds = array<i64: 128, 128>}, {pipeline_mode = #tpu.pipeline_mode<synchronous>, transform_indices = @transform_2, window_bounds = array<i64: 1, 128>}, {transform_indices = @transform_3, window_bounds = array<i64: 16, 128>}]} {
    %c0 = arith.constant 0 : index
    %c0_0 = arith.constant 0 : index
    %0 = vector.load %arg1[%c0, %c0_0] : memref<16x128xbf16, #tpu.memory_space<vmem>>, vector<16x128xbf16>
    %c0_1 = arith.constant 0 : index
    %c0_2 = arith.constant 0 : index
    %1 = vector.load %arg2[%c0_1, %c0_2] : memref<128x128xbf16, #tpu.memory_space<vmem>>, vector<128x128xbf16>
    %cst = arith.constant dense<0.000000e+00> : vector<16x128xf32>
    %2 = tpu.matmul %0, %1, %cst {dimension_numbers = #tpu.dot_dimension_numbers<[1], [0], [0], [1], [0, 0, 1, 1], [], []>} : vector<16x128xbf16>, vector<128x128xbf16>, vector<16x128xf32> -> vector<16x128xf32>
    %c0_3 = arith.constant 0 : index
    %c0_4 = arith.constant 0 : index
    %3 = vector.load %arg3[%c0_3, %c0_4] : memref<1x128xf32, #tpu.memory_space<vmem>>, vector<1x128xf32>
    %4 = vector.broadcast %3 : vector<1x128xf32> to vector<16x128xf32>
    %5 = arith.addf %2, %4 : vector<16x128xf32>
    %cst_5 = arith.constant 0.000000e+00 : f32
    %6 = vector.broadcast %cst_5 : f32 to vector<16x128xf32>
    %7 = arith.maximumf %5, %6 : vector<16x128xf32>
    %8 = arith.truncf %7 : vector<16x128xf32> to vector<16x128xbf16>
    %c0_6 = arith.constant 0 : index
    %c0_7 = arith.constant 0 : index
    %9 = vector.load %arg4[%c0_6, %c0_7] : memref<16x128xbf16, #tpu.memory_space<vmem>>, vector<16x128xbf16>
    tpu.vector_store %arg4[%c0_6, %c0_7], %8 {strides = array<i32>} : memref<16x128xbf16, #tpu.memory_space<vmem>>, vector<16x128xbf16>,
    return
  }
  func.func @transform_0(%arg0: i32) -> (i32, i32) {
    %c0_i32 = arith.constant 0 : i32
    %c0_i32_0 = arith.constant 0 : i32
    return %arg0, %c0_i32 : i32, i32
  }
  func.func @transform_1(%arg0: i32) -> (i32, i32) {
    %c0_i32 = arith.constant 0 : i32
    %c0_i32_0 = arith.constant 0 : i32
    %c0_i32_1 = arith.constant 0 : i32
    return %c0_i32, %c0_i32_0 : i32, i32
  }
  func.func @transform_2(%arg0: i32) -> (i32, i32) {
    %c0_i32 = arith.constant 0 : i32
    %c0_i32_0 = arith.constant 0 : i32
    %c0_i32_1 = arith.constant 0 : i32
    return %c0_i32, %c0_i32_0 : i32, i32
  }
  func.func @transform_3(%arg0: i32) -> (i32, i32) {
    %c0_i32 = arith.constant 0 : i32
    %c0_i32_0 = arith.constant 0 : i32
    return %arg0, %c0_i32 : i32, i32
  }
}

module attributes {stable_mosaic.version = 11 : i64} {
  func.func @_qhead_kernel(%arg0: i32, %arg1: memref<16x256xbf16, #tpu.memory_space<vmem>>, %arg2: memref<16x256xbf16, #tpu.memory_space<vmem>>, %arg3: memref<256x128xbf16, #tpu.memory_space<vmem>>, %arg4: memref<1x128xf32, #tpu.memory_space<vmem>>, %arg5: memref<256x128xbf16, #tpu.memory_space<vmem>>, %arg6: memref<1x128xf32, #tpu.memory_space<vmem>>, %arg7: memref<16x128xf32, #tpu.memory_space<vmem>>) attributes {dimension_semantics = [#tpu.dimension_semantics<parallel>], iteration_bounds = array<i64: 1>, scalar_prefetch = 0 : i64, scratch_operands = 0 : i64, tpu.core_type = #tpu.core_type<tc>, window_params = [{transform_indices = @transform_0, window_bounds = array<i64: 16, 256>}, {transform_indices = @transform_1, window_bounds = array<i64: 16, 256>}, {pipeline_mode = #tpu.pipeline_mode<synchronous>, transform_indices = @transform_2, window_bounds = array<i64: 256, 128>}, {pipeline_mode = #tpu.pipeline_mode<synchronous>, transform_indices = @transform_3, window_bounds = array<i64: 1, 128>}, {pipeline_mode = #tpu.pipeline_mode<synchronous>, transform_indices = @transform_4, window_bounds = array<i64: 256, 128>}, {pipeline_mode = #tpu.pipeline_mode<synchronous>, transform_indices = @transform_5, window_bounds = array<i64: 1, 128>}, {transform_indices = @transform_6, window_bounds = array<i64: 16, 128>}]} {
    %c0 = arith.constant 0 : index
    %c0_0 = arith.constant 0 : index
    %0 = vector.load %arg1[%c0, %c0_0] : memref<16x256xbf16, #tpu.memory_space<vmem>>, vector<16x256xbf16>
    %c0_1 = arith.constant 0 : index
    %c0_2 = arith.constant 0 : index
    %1 = vector.load %arg3[%c0_1, %c0_2] : memref<256x128xbf16, #tpu.memory_space<vmem>>, vector<256x128xbf16>
    %cst = arith.constant dense<0.000000e+00> : vector<16x128xf32>
    %2 = tpu.matmul %0, %1, %cst {dimension_numbers = #tpu.dot_dimension_numbers<[1], [0], [0], [1], [0, 0, 1, 1], [], []>} : vector<16x256xbf16>, vector<256x128xbf16>, vector<16x128xf32> -> vector<16x128xf32>
    %c0_3 = arith.constant 0 : index
    %c0_4 = arith.constant 0 : index
    %3 = vector.load %arg4[%c0_3, %c0_4] : memref<1x128xf32, #tpu.memory_space<vmem>>, vector<1x128xf32>
    %4 = vector.broadcast %3 : vector<1x128xf32> to vector<16x128xf32>
    %5 = arith.addf %2, %4 : vector<16x128xf32>
    %c0_5 = arith.constant 0 : index
    %c0_6 = arith.constant 0 : index
    %6 = vector.load %arg2[%c0_5, %c0_6] : memref<16x256xbf16, #tpu.memory_space<vmem>>, vector<16x256xbf16>
    %c0_7 = arith.constant 0 : index
    %c0_8 = arith.constant 0 : index
    %7 = vector.load %arg5[%c0_7, %c0_8] : memref<256x128xbf16, #tpu.memory_space<vmem>>, vector<256x128xbf16>
    %cst_9 = arith.constant dense<0.000000e+00> : vector<16x128xf32>
    %8 = tpu.matmul %6, %7, %cst_9 {dimension_numbers = #tpu.dot_dimension_numbers<[1], [0], [0], [1], [0, 0, 1, 1], [], []>} : vector<16x256xbf16>, vector<256x128xbf16>, vector<16x128xf32> -> vector<16x128xf32>
    %c0_10 = arith.constant 0 : index
    %c0_11 = arith.constant 0 : index
    %9 = vector.load %arg6[%c0_10, %c0_11] : memref<1x128xf32, #tpu.memory_space<vmem>>, vector<1x128xf32>
    %10 = vector.broadcast %9 : vector<1x128xf32> to vector<16x128xf32>
    %11 = arith.addf %8, %10 : vector<16x128xf32>
    %cst_12 = arith.constant dense<0.000000e+00> : vector<16xf32>
    %12 = vector.multi_reduction <add>, %5, %cst_12 [1] : vector<16x128xf32> to vector<16xf32>
    %13 = vector.shape_cast %12 : vector<16xf32> to vector<16x1xf32>
    %cst_13 = arith.constant 0.166666672 : f32
    %14 = vector.broadcast %cst_13 : f32 to vector<16x1xf32>
    %15 = arith.mulf %13, %14 : vector<16x1xf32>
    %cst_14 = arith.constant dense<0.000000e+00> : vector<16xf32>
    %16 = vector.multi_reduction <add>, %11, %cst_14 [1] : vector<16x128xf32> to vector<16xf32>
    %17 = vector.shape_cast %16 : vector<16xf32> to vector<16x1xf32>
    %18 = vector.broadcast %15 : vector<16x1xf32> to vector<16x128xf32>
    %19 = arith.subf %5, %18 : vector<16x128xf32>
    %20 = vector.broadcast %17 : vector<16x1xf32> to vector<16x128xf32>
    %21 = arith.addf %20, %19 : vector<16x128xf32>
    %c0_15 = arith.constant 0 : index
    %c0_16 = arith.constant 0 : index
    %22 = vector.load %arg7[%c0_15, %c0_16] : memref<16x128xf32, #tpu.memory_space<vmem>>, vector<16x128xf32>
    tpu.vector_store %arg7[%c0_15, %c0_16], %21 {strides = array<i32>} : memref<16x128xf32, #tpu.memory_space<vmem>>, vector<16x128xf32>,
    return
  }
  func.func @transform_0(%arg0: i32) -> (i32, i32) {
    %c0_i32 = arith.constant 0 : i32
    %c0_i32_0 = arith.constant 0 : i32
    return %arg0, %c0_i32 : i32, i32
  }
  func.func @transform_1(%arg0: i32) -> (i32, i32) {
    %c0_i32 = arith.constant 0 : i32
    %c0_i32_0 = arith.constant 0 : i32
    return %arg0, %c0_i32 : i32, i32
  }
  func.func @transform_2(%arg0: i32) -> (i32, i32) {
    %c0_i32 = arith.constant 0 : i32
    %c0_i32_0 = arith.constant 0 : i32
    %c0_i32_1 = arith.constant 0 : i32
    return %c0_i32, %c0_i32_0 : i32, i32
  }
  func.func @transform_3(%arg0: i32) -> (i32, i32) {
    %c0_i32 = arith.constant 0 : i32
    %c0_i32_0 = arith.constant 0 : i32
    %c0_i32_1 = arith.constant 0 : i32
    return %c0_i32, %c0_i32_0 : i32, i32
  }
  func.func @transform_4(%arg0: i32) -> (i32, i32) {
    %c0_i32 = arith.constant 0 : i32
    %c0_i32_0 = arith.constant 0 : i32
    %c0_i32_1 = arith.constant 0 : i32
    return %c0_i32, %c0_i32_0 : i32, i32
  }
  func.func @transform_5(%arg0: i32) -> (i32, i32) {
    %c0_i32 = arith.constant 0 : i32
    %c0_i32_0 = arith.constant 0 : i32
    %c0_i32_1 = arith.constant 0 : i32
    return %c0_i32, %c0_i32_0 : i32, i32
  }
  func.func @transform_6(%arg0: i32) -> (i32, i32) {
    %c0_i32 = arith.constant 0 : i32
    %c0_i32_0 = arith.constant 0 : i32
    return %arg0, %c0_i32 : i32, i32
  }
}

module attributes {stable_mosaic.version = 11 : i64} {
  func.func @_mm_bias_act_kernel(%arg0: i32, %arg1: memref<16x256xbf16, #tpu.memory_space<vmem>>, %arg2: memref<256x128xbf16, #tpu.memory_space<vmem>>, %arg3: memref<1x128xf32, #tpu.memory_space<vmem>>, %arg4: memref<16x128xbf16, #tpu.memory_space<vmem>>) attributes {dimension_semantics = [#tpu.dimension_semantics<parallel>], iteration_bounds = array<i64: 1>, scalar_prefetch = 0 : i64, scratch_operands = 0 : i64, tpu.core_type = #tpu.core_type<tc>, window_params = [{transform_indices = @transform_0, window_bounds = array<i64: 16, 256>}, {pipeline_mode = #tpu.pipeline_mode<synchronous>, transform_indices = @transform_1, window_bounds = array<i64: 256, 128>}, {pipeline_mode = #tpu.pipeline_mode<synchronous>, transform_indices = @transform_2, window_bounds = array<i64: 1, 128>}, {transform_indices = @transform_3, window_bounds = array<i64: 16, 128>}]} {
    %c0 = arith.constant 0 : index
    %c0_0 = arith.constant 0 : index
    %0 = vector.load %arg1[%c0, %c0_0] : memref<16x256xbf16, #tpu.memory_space<vmem>>, vector<16x256xbf16>
    %c0_1 = arith.constant 0 : index
    %c0_2 = arith.constant 0 : index
    %1 = vector.load %arg2[%c0_1, %c0_2] : memref<256x128xbf16, #tpu.memory_space<vmem>>, vector<256x128xbf16>
    %cst = arith.constant dense<0.000000e+00> : vector<16x128xf32>
    %2 = tpu.matmul %0, %1, %cst {dimension_numbers = #tpu.dot_dimension_numbers<[1], [0], [0], [1], [0, 0, 1, 1], [], []>} : vector<16x256xbf16>, vector<256x128xbf16>, vector<16x128xf32> -> vector<16x128xf32>
    %c0_3 = arith.constant 0 : index
    %c0_4 = arith.constant 0 : index
    %3 = vector.load %arg3[%c0_3, %c0_4] : memref<1x128xf32, #tpu.memory_space<vmem>>, vector<1x128xf32>
    %4 = vector.broadcast %3 : vector<1x128xf32> to vector<16x128xf32>
    %5 = arith.addf %2, %4 : vector<16x128xf32>
    %cst_5 = arith.constant 0.000000e+00 : f32
    %6 = vector.broadcast %cst_5 : f32 to vector<16x128xf32>
    %7 = arith.maximumf %5, %6 : vector<16x128xf32>
    %8 = arith.truncf %7 : vector<16x128xf32> to vector<16x128xbf16>
    %c0_6 = arith.constant 0 : index
    %c0_7 = arith.constant 0 : index
    %9 = vector.load %arg4[%c0_6, %c0_7] : memref<16x128xbf16, #tpu.memory_space<vmem>>, vector<16x128xbf16>
    tpu.vector_store %arg4[%c0_6, %c0_7], %8 {strides = array<i32>} : memref<16x128xbf16, #tpu.memory_space<vmem>>, vector<16x128xbf16>,
    return
  }
  func.func @transform_0(%arg0: i32) -> (i32, i32) {
    %c0_i32 = arith.constant 0 : i32
    %c0_i32_0 = arith.constant 0 : i32
    return %arg0, %c0_i32 : i32, i32
  }
  func.func @transform_1(%arg0: i32) -> (i32, i32) {
    %c0_i32 = arith.constant 0 : i32
    %c0_i32_0 = arith.constant 0 : i32
    %c0_i32_1 = arith.constant 0 : i32
    return %c0_i32, %c0_i32_0 : i32, i32
  }
  func.func @transform_2(%arg0: i32) -> (i32, i32) {
    %c0_i32 = arith.constant 0 : i32
    %c0_i32_0 = arith.constant 0 : i32
    %c0_i32_1 = arith.constant 0 : i32
    return %c0_i32, %c0_i32_0 : i32, i32
  }
  func.func @transform_3(%arg0: i32) -> (i32, i32) {
    %c0_i32 = arith.constant 0 : i32
    %c0_i32_0 = arith.constant 0 : i32
    return %arg0, %c0_i32 : i32, i32
  }
}

</mosaic_0001>

<llo_original>
// kernel: eq.1
$region0: #{eq.1}
  %s0 = inlined_call_operand.vmem [shape: s32[8,2], index: 0, kind: input, shape index: {}]
  %s1 = inlined_call_operand.vmem [shape: s32[16], index: 1, kind: output, shape index: {}]
  $region1: #{eq.1} parent=0
    #allocation0 [shape = 'u8[4096]{0}', space=vmem, size = 0x1000, scoped, tag = 'scoped mem for output reshape']
    %v2 = vld [vmem:[%s0] sm:$0x1]
    %vm3 = vcmask 15360
    %4 = vst.msk [vmem:[#allocation0] sm:$0x1] %vm3, %v2
    %s5 = scalar_lea.vmem %s0, 7
    %v6 = vld [vmem:[%s5] sm:$0x1]
    %7 = vrot.lane.b32.xlu0 %v6, 14
    %v8 = vpop.permute.xlu0 %7
    %vm9 = vcmask 130160
    %10 = vst.msk [vmem:[#allocation0] sm:$0x1] %vm9, %v8
    %s11 = scalar_lea.vmem %s0, 6
    %v12 = vld [vmem:[%s11] sm:$0x1]
    %13 = vrot.lane.b32.xlu0 %v12, 12
    %v14 = vpop.permute.xlu0 %13
    %vm15 = vcmask 113760
    %16 = vst.msk [vmem:[#allocation0] sm:$0x1] %vm15, %v14
    %s17 = scalar_lea.vmem %s0, 5
    %v18 = vld [vmem:[%s17] sm:$0x1]
    %19 = vrot.lane.b32.xlu0 %v18, 10
    %v20 = vpop.permute.xlu0 %19
    %vm21 = vcmask 97360
    %22 = vst.msk [vmem:[#allocation0] sm:$0x1] %vm21, %v20
    %s23 = scalar_lea.vmem %s0, 4
    %v24 = vld [vmem:[%s23] sm:$0x1]
    %25 = vrot.lane.b32.xlu0 %v24, 8
    %v26 = vpop.permute.xlu0 %25
    %vm27 = vcmask 80960
    %28 = vst.msk [vmem:[#allocation0] sm:$0x1] %vm27, %v26
    %s29 = scalar_lea.vmem %s0, 3
    %v30 = vld [vmem:[%s29] sm:$0x1]
    %31 = vrot.lane.b32.xlu0 %v30, 6
    %v32 = vpop.permute.xlu0 %31
    %vm33 = vcmask 64560
    %34 = vst.msk [vmem:[#allocation0] sm:$0x1] %vm33, %v32
    %s35 = scalar_lea.vmem %s0, 2
    %v36 = vld [vmem:[%s35] sm:$0x1]
    %37 = vrot.lane.b32.xlu0 %v36, 4
    %v38 = vpop.permute.xlu0 %37
    %vm39 = vcmask 48160
    %40 = vst.msk [vmem:[#allocation0] sm:$0x1] %vm39, %v38
    %s41 = scalar_lea.vmem %s0, 1
    %v42 = vld [vmem:[%s41] sm:$0x1]
    %43 = vrot.lane.b32.xlu0 %v42, 2
    %v44 = vpop.permute.xlu0 %43
    %vm45 = vcmask 31760
    %46 = vst.msk [vmem:[#allocation0] sm:$0x1] %vm45, %v44
    %s48 = sshllo.u32 0, 1
    %v50 = vld [vmem:[#allocation0] sm:%s48]
    %s51 = sshllo.u32 0, 1
    %52 = vst [vmem:[%s1] sm:%s51] %v50

// kernel: r2d2_mlp_forward.11
$region0: #{r2d2_mlp_forward.11}
  #allocation0 [shape = 'u32[]', space=smem, size = 0x4, offset = 0x4, fixed_abs, tag = 'smem constant byte address 0x4 - core index']
  #allocation1 [shape = 'u32[144,128]{1,0:T(1,128)}', space=vmem, size = 0x12000, scoped, tag = 'internal scratch']
  %s0 = inlined_call_operand.vmem [shape: bf16[16,32], index: 0, kind: input, shape index: {}]
  %s1 = inlined_call_operand.vmem [shape: bf16[32,128], index: 1, kind: input, shape index: {}]
  %s2 = inlined_call_operand.vmem [shape: f32[1,128], index: 2, kind: input, shape index: {}]
  %s3 = inlined_call_operand.vmem [shape: bf16[16,128], index: 3, kind: output, shape index: {}]
  %s4 = sld [smem:[#allocation0]]
  $region22: #{r2d2_mlp_forward.11} parent=0
    _
  %s6 = ssub.s32 1, %s4
  %s7 = scalar_select 0, %s6, %s4
  // Predicated region
  $region2: #{r2d2_mlp_forward.11} parent=0 // pred_check
    _
  $region3: #{r2d2_mlp_forward.11} parent=0 // pred_check_branch
    %9 = sbr.rel (0) target = $region5
  $region4: #{r2d2_mlp_forward.11} parent=0 // pred_region
    _
  $region5: #{r2d2_mlp_forward.11} parent=0 // pred_fallthru
    _
  // Predicated region
  $region6: #{r2d2_mlp_forward.11} parent=0 // pred_check
    _
  $region7: #{r2d2_mlp_forward.11} parent=0 // pred_check_branch
    %11 = sbr.rel (0) target = $region9
  $region8: #{r2d2_mlp_forward.11} parent=0 // pred_region
    _
  $region9: #{r2d2_mlp_forward.11} parent=0 // pred_fallthru
    _
  // Predicated region
  $region10: #{r2d2_mlp_forward.11} parent=0 // pred_check
    _
  $region11: #{r2d2_mlp_forward.11} parent=0 // pred_check_branch
    %13 = sbr.rel (0) target = $region13
  $region12: #{r2d2_mlp_forward.11} parent=0 // pred_region
    _
  $region13: #{r2d2_mlp_forward.11} parent=0 // pred_fallthru
    _
  %v15 = vld [vmem:[%s0] sm:$0xf]
  %v16 = vld [vmem:[%s0 + $0x4] sm:$0xf]
  %v17 = vld [vmem:[%s1] sm:$0xf]
  %v18 = vld [vmem:[%s1 + $0x4] sm:$0xf]
  %v19 = vld [vmem:[%s1 + $0x8] sm:$0xf]
  %v20 = vld [vmem:[%s1 + $0xc] sm:$0xf]
  %v21 = vld [vmem:[%s2] sm:$0x1]
  %v23 = vlaneseq
  %v24 = vshrl.u32 %v23, 7
  %v25 = vsub.s32 0, %v24
  %v26 = vrot.slane %v21, %v25
  %v30 = vunpack.c.l.b16 %v15
  %v31 = vunpack.c.l.b16 %v16
  %v32 = vpack.c.b16 %v31, %v30
  %v37 = vunpack.c.l.b16 %v17
  %v38 = vunpack.c.l.b16 %v18
  %v39 = vunpack.c.l.b16 %v19
  %v40 = vunpack.c.l.b16 %v20
  %v41 = vpack.c.b16 %v38, %v37
  %v42 = vpack.c.b16 %v40, %v39
  %vm45 = vcmask 261120
  %v47 = vsel %vm45, %v32, 0
  %49 = vmatprep.subr.bf16.mxu0 0
  %50 = vmatpush1.bf16.msra.mxu0 %v41
  %51 = vmatprep.subr.bf16.mxu0 0
  %52 = vmatpush1.bf16.msra.mxu0 %v42
  %53 = vmatprep.subr.bf16.mxu0 0
  %54 = vmatpush1.bf16.msra.mxu0 0
  %55 = vmatprep.subr.bf16.mxu0 0
  %56 = vmatpush1.bf16.msra.mxu0 0
  %57 = vmatprep.subr.bf16.mxu0 0
  %58 = vmatpush1.bf16.msra.mxu0 0
  %59 = vmatprep.subr.bf16.mxu0 0
  %60 = vmatpush1.bf16.msra.mxu0 0
  %61 = vmatprep.subr.bf16.mxu0 0
  %62 = vmatpush1.bf16.msra.mxu0 0
  %63 = vmatprep.subr.bf16.mxu0 0
  %64 = vmatpush1.bf16.msra.mxu0 0
  %65 = vmatprep.subr.bf16.mxu0 0
  %66 = vmatpush1.bf16.msra.mxu0 0
  %67 = vmatprep.subr.bf16.mxu0 0
  %68 = vmatpush1.bf16.msra.mxu0 0
  %69 = vmatprep.subr.bf16.mxu0 0
  %70 = vmatpush1.bf16.msra.mxu0 0
  %71 = vmatprep.subr.bf16.mxu0 0
  %72 = vmatpush1.bf16.msra.mxu0 0
  %73 = vmatprep.subr.bf16.mxu0 0
  %74 = vmatpush1.bf16.msra.mxu0 0
  %75 = vmatprep.subr.bf16.mxu0 0
  %76 = vmatpush1.bf16.msra.mxu0 0
  %77 = vmatprep.subr.bf16.mxu0 0
  %78 = vmatpush1.bf16.msra.mxu0 0
  %79 = vmatprep.subr.bf16.mxu0 0
  %80 = vmatpush1.bf16.msra.mxu0 0
  %81 = vmatprep.mubr.bf16.mxu0 0
  %82 = vmatmul.mubr.bf16.gmra.mrb[0].mxu0 %v47
  %v83 = vpop.f32.mrb[0].mxu0
  %v84 = vadd.f32 %v26, %v83
  %v85 = vpop.f32.mrb[0].mxu0
  %v86 = vpop.f32.mrb[0].mxu0
  %v87 = vadd.f32 %v26, %v86
  %v88 = vpop.f32.mrb[0].mxu0
  %89 = vdwg.mxu0
  %v90 = vmax.f32 %v84, 0.0
  %v91 = vmax.f32 %v87, 0.0
  %v92 = vpack.c.bf16 %v91, %v90
  %v94 = vunpack.c.l.b16 %v92
  %v95 = vunpack.c.h.b16 %v92
  %v96 = vpack.c.b16 %v94, %v94
  %v97 = vpack.c.b16 %v95, %v95
  %100 = vst [vmem:[%s3] sm:$0xf] %v96
  %101 = vst [vmem:[%s3 + $0x4] sm:$0xf] %v97
  // Predicated region
  $region14: #{r2d2_mlp_forward.11} parent=0 // pred_check
    _
  $region15: #{r2d2_mlp_forward.11} parent=0 // pred_check_branch
    %103 = sbr.rel (0) target = $region17
  $region16: #{r2d2_mlp_forward.11} parent=0 // pred_region
    _
  $region17: #{r2d2_mlp_forward.11} parent=0 // pred_fallthru
    _
  // Predicated region
  $region18: #{r2d2_mlp_forward.11} parent=0 // pred_check
    _
  $region19: #{r2d2_mlp_forward.11} parent=0 // pred_check_branch
    %105 = sbr.rel (0) target = $region21
  $region20: #{r2d2_mlp_forward.11} parent=0 // pred_region
    _
  $region21: #{r2d2_mlp_forward.11} parent=0 // pred_fallthru
    _

// kernel: r2d2_mlp_forward.12
$region0: #{r2d2_mlp_forward.12}
  #allocation0 [shape = 'u32[]', space=smem, size = 0x4, offset = 0x4, fixed_abs, tag = 'smem constant byte address 0x4 - core index']
  #allocation1 [shape = 'u32[144,128]{1,0:T(1,128)}', space=vmem, size = 0x12000, scoped, tag = 'internal scratch']
  %s0 = inlined_call_operand.vmem [shape: bf16[16,128], index: 0, kind: input, shape index: {}]
  %s1 = inlined_call_operand.vmem [shape: bf16[128,256], index: 1, kind: input, shape index: {}]
  %s2 = inlined_call_operand.vmem [shape: f32[1,256], index: 2, kind: input, shape index: {}]
  %s3 = inlined_call_operand.vmem [shape: bf16[16,256], index: 3, kind: output, shape index: {}]
  %s4 = sld [smem:[#allocation0]]
  $region22: #{r2d2_mlp_forward.12} parent=0
    _
  %s6 = ssub.s32 1, %s4
  %s7 = scalar_select 0, %s6, %s4
  // Predicated region
  $region2: #{r2d2_mlp_forward.12} parent=0 // pred_check
    _
  $region3: #{r2d2_mlp_forward.12} parent=0 // pred_check_branch
    %9 = sbr.rel (0) target = $region5
  $region4: #{r2d2_mlp_forward.12} parent=0 // pred_region
    _
  $region5: #{r2d2_mlp_forward.12} parent=0 // pred_fallthru
    _
  // Predicated region
  $region6: #{r2d2_mlp_forward.12} parent=0 // pred_check
    _
  $region7: #{r2d2_mlp_forward.12} parent=0 // pred_check_branch
    %11 = sbr.rel (0) target = $region9
  $region8: #{r2d2_mlp_forward.12} parent=0 // pred_region
    _
  $region9: #{r2d2_mlp_forward.12} parent=0 // pred_fallthru
    _
  // Predicated region
  $region10: #{r2d2_mlp_forward.12} parent=0 // pred_check
    _
  $region11: #{r2d2_mlp_forward.12} parent=0 // pred_check_branch
    %13 = sbr.rel (0) target = $region13
  $region12: #{r2d2_mlp_forward.12} parent=0 // pred_region
    _
  $region13: #{r2d2_mlp_forward.12} parent=0 // pred_fallthru
    _
  %v15 = vld [vmem:[%s0] sm:$0xf]
  %v16 = vld [vmem:[%s0 + $0x4] sm:$0xf]
  %v17 = vld [vmem:[%s1] sm:$0xff]
  %v18 = vld [vmem:[%s1 + $0x8] sm:$0xff]
  %v19 = vld [vmem:[%s1 + $0x10] sm:$0xff]
  %v20 = vld [vmem:[%s1 + $0x18] sm:$0xff]
  %v21 = vld [vmem:[%s1 + $0x20] sm:$0xff]
  %v22 = vld [vmem:[%s1 + $0x28] sm:$0xff]
  %v23 = vld [vmem:[%s1 + $0x30] sm:$0xff]
  %v24 = vld [vmem:[%s1 + $0x38] sm:$0xff]
  %v25 = vld [vmem:[%s1 + $0x40] sm:$0xff]
  %v26 = vld [vmem:[%s1 + $0x48] sm:$0xff]
  %v27 = vld [vmem:[%s1 + $0x50] sm:$0xff]
  %v28 = vld [vmem:[%s1 + $0x58] sm:$0xff]
  %v29 = vld [vmem:[%s1 + $0x60] sm:$0xff]
  %v30 = vld [vmem:[%s1 + $0x68] sm:$0xff]
  %v31 = vld [vmem:[%s1 + $0x70] sm:$0xff]
  %v32 = vld [vmem:[%s1 + $0x78] sm:$0xff]
  %v33 = vld [vmem:[%s2] sm:$0x3]
  %v35 = vlaneseq
  %v36 = vshrl.u32 %v35, 7
  %v37 = vsub.s32 0, %v36
  %v38 = vrot.slane %v33, %v37
  %v39 = vlaneseq
  %v40 = vshrl.u32 %v39, 7
  %v41 = vsub.s32 1, %v40
  %v42 = vrot.slane %v33, %v41
  %v47 = vunpack.c.l.b16 %v15
  %v48 = vunpack.c.l.b16 %v16
  %v49 = vpack.c.b16 %v48, %v47
  %v67 = vunpack.c.l.b16 %v17
  %v68 = vunpack.c.h.b16 %v17
  %v69 = vunpack.c.l.b16 %v18
  %v70 = vunpack.c.h.b16 %v18
  %v71 = vunpack.c.l.b16 %v19
  %v72 = vunpack.c.h.b16 %v19
  %v73 = vunpack.c.l.b16 %v20
  %v74 = vunpack.c.h.b16 %v20
  %v75 = vunpack.c.l.b16 %v21
  %v76 = vunpack.c.h.b16 %v21
  %v77 = vunpack.c.l.b16 %v22
  %v78 = vunpack.c.h.b16 %v22
  %v79 = vunpack.c.l.b16 %v23
  %v80 = vunpack.c.h.b16 %v23
  %v81 = vunpack.c.l.b16 %v24
  %v82 = vunpack.c.h.b16 %v24
  %v83 = vunpack.c.l.b16 %v25
  %v84 = vunpack.c.h.b16 %v25
  %v85 = vunpack.c.l.b16 %v26
  %v86 = vunpack.c.h.b16 %v26
  %v87 = vunpack.c.l.b16 %v27
  %v88 = vunpack.c.h.b16 %v27
  %v89 = vunpack.c.l.b16 %v28
  %v90 = vunpack.c.h.b16 %v28
  %v91 = vunpack.c.l.b16 %v29
  %v92 = vunpack.c.h.b16 %v29
  %v93 = vunpack.c.l.b16 %v30
  %v94 = vunpack.c.h.b16 %v30
  %v95 = vunpack.c.l.b16 %v31
  %v96 = vunpack.c.h.b16 %v31
  %v97 = vunpack.c.l.b16 %v32
  %v98 = vunpack.c.h.b16 %v32
  %v99 = vpack.c.b16 %v69, %v67
  %v100 = vpack.c.b16 %v70, %v68
  %v101 = vpack.c.b16 %v73, %v71
  %v102 = vpack.c.b16 %v74, %v72
  %v103 = vpack.c.b16 %v77, %v75
  %v104 = vpack.c.b16 %v78, %v76
  %v105 = vpack.c.b16 %v81, %v79
  %v106 = vpack.c.b16 %v82, %v80
  %v107 = vpack.c.b16 %v85, %v83
  %v108 = vpack.c.b16 %v86, %v84
  %v109 = vpack.c.b16 %v89, %v87
  %v110 = vpack.c.b16 %v90, %v88
  %v111 = vpack.c.b16 %v93, %v91
  %v112 = vpack.c.b16 %v94, %v92
  %v113 = vpack.c.b16 %v97, %v95
  %v114 = vpack.c.b16 %v98, %v96
  %131 = vmatprep.subr.bf16.mxu0 %v100
  %132 = vmatpush1.bf16.msra.mxu0 %v99
  %133 = vmatprep.subr.bf16.mxu0 %v102
  %134 = vmatpush1.bf16.msra.mxu0 %v101
  %135 = vmatprep.subr.bf16.mxu0 %v104
  %136 = vmatpush1.bf16.msra.mxu0 %v103
  %137 = vmatprep.subr.bf16.mxu0 %v106
  %138 = vmatpush1.bf16.msra.mxu0 %v105
  %139 = vmatprep.subr.bf16.mxu0 %v108
  %140 = vmatpush1.bf16.msra.mxu0 %v107
  %141 = vmatprep.subr.bf16.mxu0 %v110
  %142 = vmatpush1.bf16.msra.mxu0 %v109
  %143 = vmatprep.subr.bf16.mxu0 %v112
  %144 = vmatpush1.bf16.msra.mxu0 %v111
  %145 = vmatprep.subr.bf16.mxu0 %v114
  %146 = vmatpush1.bf16.msra.mxu0 %v113
  %147 = vmatprep.subr.bf16.mxu0 0
  %148 = vmatpush1.bf16.msra.mxu0 0
  %149 = vmatprep.subr.bf16.mxu0 0
  %150 = vmatpush1.bf16.msra.mxu0 0
  %151 = vmatprep.subr.bf16.mxu0 0
  %152 = vmatpush1.bf16.msra.mxu0 0
  %153 = vmatprep.subr.bf16.mxu0 0
  %154 = vmatpush1.bf16.msra.mxu0 0
  %155 = vmatprep.subr.bf16.mxu0 0
  %156 = vmatpush1.bf16.msra.mxu0 0
  %157 = vmatprep.subr.bf16.mxu0 0
  %158 = vmatpush1.bf16.msra.mxu0 0
  %159 = vmatprep.subr.bf16.mxu0 0
  %160 = vmatpush1.bf16.msra.mxu0 0
  %161 = vmatprep.subr.bf16.mxu0 0
  %162 = vmatpush1.bf16.msra.mxu0 0
  %163 = vmatprep.mubr.bf16.mxu0 0
  %164 = vmatmul.mubr.bf16.gmra.mrb[0].mxu0 %v49
  %v165 = vpop.f32.mrb[0].mxu0
  %v166 = vadd.f32 %v38, %v165
  %v167 = vpop.f32.mrb[0].mxu0
  %v168 = vadd.f32 %v42, %v167
  %v169 = vpop.f32.mrb[0].mxu0
  %v170 = vadd.f32 %v38, %v169
  %v171 = vpop.f32.mrb[0].mxu0
  %v172 = vadd.f32 %v42, %v171
  %173 = vdwg.mxu0
  %v174 = vmax.f32 %v166, 0.0
  %v175 = vmax.f32 %v168, 0.0
  %v176 = vmax.f32 %v170, 0.0
  %v177 = vmax.f32 %v172, 0.0
  %v178 = vpack.c.bf16 %v176, %v174
  %v179 = vpack.c.bf16 %v177, %v175
  %v182 = vunpack.c.l.b16 %v178
  %v183 = vunpack.c.l.b16 %v179
  %v184 = vunpack.c.h.b16 %v178
  %v185 = vunpack.c.h.b16 %v179
  %v186 = vpack.c.b16 %v183, %v182
  %v187 = vpack.c.b16 %v185, %v184
  %190 = vst [vmem:[%s3] sm:$0xff] %v186
  %191 = vst [vmem:[%s3 + $0x8] sm:$0xff] %v187
  // Predicated region
  $region14: #{r2d2_mlp_forward.12} parent=0 // pred_check
    _
  $region15: #{r2d2_mlp_forward.12} parent=0 // pred_check_branch
    %193 = sbr.rel (0) target = $region17
  $region16: #{r2d2_mlp_forward.12} parent=0 // pred_region
    _
  $region17: #{r2d2_mlp_forward.12} parent=0 // pred_fallthru
    _
  // Predicated region
  $region18: #{r2d2_mlp_forward.12} parent=0 // pred_check
    _
  $region19: #{r2d2_mlp_forward.12} parent=0 // pred_check_branch
    %195 = sbr.rel (0) target = $region21
  $region20: #{r2d2_mlp_forward.12} parent=0 // pred_region
    _
  $region21: #{r2d2_mlp_forward.12} parent=0 // pred_fallthru
    _

// kernel: r2d2_mlp_forward.13
$region0: #{r2d2_mlp_forward.13}
  #allocation0 [shape = 'u32[]', space=smem, size = 0x4, offset = 0x4, fixed_abs, tag = 'smem constant byte address 0x4 - core index']
  #allocation1 [shape = 'u32[144,128]{1,0:T(1,128)}', space=vmem, size = 0x12000, scoped, tag = 'internal scratch']
  %s0 = inlined_call_operand.vmem [shape: bf16[16,263], index: 0, kind: input, shape index: {}]
  %s1 = inlined_call_operand.hbm [shape: bf16[263,512], index: 1, kind: input, shape index: {}]
  %s2 = inlined_call_operand.vmem [shape: f32[1,512], index: 2, kind: input, shape index: {}]
  %s3 = inlined_call_operand.vmem [shape: f32[16,512], index: 3, kind: output, shape index: {}]
  %s4 = sld [smem:[#allocation0]]
  $region26: #{r2d2_mlp_forward.13} parent=0
    _
  %s6 = ssub.s32 1, %s4
  %s7 = scalar_select 0, %s6, %s4
  $region1: #{r2d2_mlp_forward.13} parent=0
    #allocation2 [shape = 'u8[270336]{0}', space=vmem, size = 0x42000, scoped, tag = 'input window, operand 1, single buffered']
    #allocation3 [shape = 's32[1]{0}', space=sflag, size = 0x4, scoped, tag = 'scoped memory for r2d2_mlp_forward.13']
    %8 = vsyncpa [#allocation3], 0
    // Predicated region
    $region2: #{r2d2_mlp_forward.13} parent=1 // pred_check
      _
    $region3: #{r2d2_mlp_forward.13} parent=1 // pred_check_branch
      %10 = sbr.rel (0) target = $region5
    $region4: #{r2d2_mlp_forward.13} parent=1 // pred_region
      _
    $region5: #{r2d2_mlp_forward.13} parent=1 // pred_fallthru
      _
    // Predicated region
    $region6: #{r2d2_mlp_forward.13} parent=1 // pred_check
      _
    $region7: #{r2d2_mlp_forward.13} parent=1 // pred_check_branch
      %12 = sbr.rel (0) target = $region9
    $region8: #{r2d2_mlp_forward.13} parent=1 // pred_region
      %s14 = ssub.s32 8448, 8448
      %15 = vsyncadd [#allocation3], %s14
      %s16 = sshll.u32 [#allocation2], 4
      %s17 = int_to_ptr.vmem [resolvable:$true] %s16
      %22 = dma.hbm_to_vmem [thread:$0]  %s1, 8448, %s17, [#allocation3], 256, 256, 16
    $region9: #{r2d2_mlp_forward.13} parent=1 // pred_fallthru
      _
    // Predicated region
    $region10: #{r2d2_mlp_forward.13} parent=1 // pred_check
      _
    $region11: #{r2d2_mlp_forward.13} parent=1 // pred_check_branch
      %24 = sbr.rel (0) target = $region13
    $region12: #{r2d2_mlp_forward.13} parent=1 // pred_region
      _
    $region13: #{r2d2_mlp_forward.13} parent=1 // pred_fallthru
      _
    // Predicated region
    $region14: #{r2d2_mlp_forward.13} parent=1 // pred_check
      _
    $region15: #{r2d2_mlp_forward.13} parent=1 // pred_check_branch
      %26 = sbr.rel (0) target = $region17
    $region16: #{r2d2_mlp_forward.13} parent=1 // pred_region
      %27 = dma.done [#allocation3], 8448
    $region17: #{r2d2_mlp_forward.13} parent=1 // pred_fallthru
      _
    %v29 = vld [vmem:[%s0] sm:$0xff]
    %v30 = vld [vmem:[%s0 + $0x8] sm:$0xf]
    %v31 = vld [vmem:[%s0 + $0xc] sm:$0xff]
    %v32 = vld [vmem:[%s0 + $0x14] sm:$0xf]
    %v33 = vld [vmem:[#allocation2] sm:$0xff]
    %v34 = vld [vmem:[#allocation2 + $0x8] sm:$0xff]
    %v35 = vld [vmem:[#allocation2 + $0x10] sm:$0xff]
    %v36 = vld [vmem:[#allocation2 + $0x18] sm:$0xff]
    %v37 = vld [vmem:[#allocation2 + $0x20] sm:$0xff]
    %v38 = vld [vmem:[#allocation2 + $0x28] sm:$0xff]
    %v39 = vld [vmem:[#allocation2 + $0x30] sm:$0xff]
    %v40 = vld [vmem:[#allocation2 + $0x38] sm:$0xff]
    %v41 = vld [vmem:[#allocation2 + $0x40] sm:$0xff]
    %v42 = vld [vmem:[#allocation2 + $0x48] sm:$0xff]
    %v43 = vld [vmem:[#allocation2 + $0x50] sm:$0xff]
    %v44 = vld [vmem:[#allocation2 + $0x58] sm:$0xff]
    %v45 = vld [vmem:[#allocation2 + $0x60] sm:$0xff]
    %v46 = vld [vmem:[#allocation2 + $0x68] sm:$0xff]
    %v47 = vld [vmem:[#allocation2 + $0x70] sm:$0xff]
    %v48 = vld [vmem:[#allocation2 + $0x78] sm:$0xff]
    %v49 = vld [vmem:[#allocation2 + $0x80] sm:$0xff]
    %v50 = vld [vmem:[#allocation2 + $0x88] sm:$0xff]
    %v51 = vld [vmem:[#allocation2 + $0x90] sm:$0xff]
    %v52 = vld [vmem:[#allocation2 + $0x98] sm:$0xff]
    %v53 = vld [vmem:[#allocation2 + $0xa0] sm:$0xff]
    %v54 = vld [vmem:[#allocation2 + $0xa8] sm:$0xff]
    %v55 = vld [vmem:[#allocation2 + $0xb0] sm:$0xff]
    %v56 = vld [vmem:[#allocation2 + $0xb8] sm:$0xff]
    %v57 = vld [vmem:[#allocation2 + $0xc0] sm:$0xff]
    %v58 = vld [vmem:[#allocation2 + $0xc8] sm:$0xff]
    %v59 = vld [vmem:[#allocation2 + $0xd0] sm:$0xff]
    %v60 = vld [vmem:[#allocation2 + $0xd8] sm:$0xff]
    %v61 = vld [vmem:[#allocation2 + $0xe0] sm:$0xff]
    %v62 = vld [vmem:[#allocation2 + $0xe8] sm:$0xff]
    %v63 = vld [vmem:[#allocation2 + $0xf0] sm:$0xff]
    %v64 = vld [vmem:[#allocation2 + $0xf8] sm:$0xff]
    %v65 = vld [vmem:[#allocation2 + $0x100] sm:$0xff]
    %v66 = vld [vmem:[#allocation2 + $0x108] sm:$0xff]
    %v67 = vld [vmem:[#allocation2 + $0x110] sm:$0xff]
    %v68 = vld [vmem:[#allocation2 + $0x118] sm:$0xff]
    %v69 = vld [vmem:[#allocation2 + $0x120] sm:$0xff]
    %v70 = vld [vmem:[#allocation2 + $0x128] sm:$0xff]
    %v71 = vld [vmem:[#allocation2 + $0x130] sm:$0xff]
    %v72 = vld [vmem:[#allocation2 + $0x138] sm:$0xff]
    %v73 = vld [vmem:[#allocation2 + $0x140] sm:$0xff]
    %v74 = vld [vmem:[#allocation2 + $0x148] sm:$0xff]
    %v75 = vld [vmem:[#allocation2 + $0x150] sm:$0xff]
    %v76 = vld [vmem:[#allocation2 + $0x158] sm:$0xff]
    %v77 = vld [vmem:[#allocation2 + $0x160] sm:$0xff]
    %v78 = vld [vmem:[#allocation2 + $0x168] sm:$0xff]
    %v79 = vld [vmem:[#allocation2 + $0x170] sm:$0xff]
    %v80 = vld [vmem:[#allocation2 + $0x178] sm:$0xff]
    %v81 = vld [vmem:[#allocation2 + $0x180] sm:$0xff]
    %v82 = vld [vmem:[#allocation2 + $0x188] sm:$0xff]
    %v83 = vld [vmem:[#allocation2 + $0x190] sm:$0xff]
    %v84 = vld [vmem:[#allocation2 + $0x198] sm:$0xff]
    %v85 = vld [vmem:[#allocation2 + $0x1a0] sm:$0xff]
    %v86 = vld [vmem:[#allocation2 + $0x1a8] sm:$0xff]
    %v87 = vld [vmem:[#allocation2 + $0x1b0] sm:$0xff]
    %v88 = vld [vmem:[#allocation2 + $0x1b8] sm:$0xff]
    %v89 = vld [vmem:[#allocation2 + $0x1c0] sm:$0xff]
    %v90 = vld [vmem:[#allocation2 + $0x1c8] sm:$0xff]
    %v91 = vld [vmem:[#allocation2 + $0x1d0] sm:$0xff]
    %v92 = vld [vmem:[#allocation2 + $0x1d8] sm:$0xff]
    %v93 = vld [vmem:[#allocation2 + $0x1e0] sm:$0xff]
    %v94 = vld [vmem:[#allocation2 + $0x1e8] sm:$0xff]
    %v95 = vld [vmem:[#allocation2 + $0x1f0] sm:$0xff]
    %v96 = vld [vmem:[#allocation2 + $0x1f8] sm:$0xff]
    %v97 = vld [vmem:[#allocation2 + $0x200] sm:$0xff]
    %v98 = vld [vmem:[#allocation2 + $0x208] sm:$0xff]
    %v99 = vld [vmem:[%s2] sm:$0xf]
    %v101 = vlaneseq
    %v102 = vshrl.u32 %v101, 7
    %v103 = vsub.s32 0, %v102
    %v104 = vrot.slane %v99, %v103
    %v105 = vlaneseq
    %v106 = vshrl.u32 %v105, 7
    %v107 = vsub.s32 1, %v106
    %v108 = vrot.slane %v99, %v107
    %v109 = vlaneseq
    %v110 = vshrl.u32 %v109, 7
    %v111 = vsub.s32 2, %v110
    %v112 = vrot.slane %v99, %v111
    %v113 = vlaneseq
    %v114 = vshrl.u32 %v113, 7
    %v115 = vsub.s32 3, %v114
    %v116 = vrot.slane %v99, %v115
    %v125 = vunpack.c.l.b16 %v29
    %v126 = vunpack.c.h.b16 %v29
    %v127 = vunpack.c.l.b16 %v30
    %v128 = vunpack.c.l.b16 %v31
    %v129 = vunpack.c.h.b16 %v31
    %v130 = vunpack.c.l.b16 %v32
    %v131 = vpack.c.b16 %v128, %v125
    %v132 = vpack.c.b16 %v129, %v126
    %v133 = vpack.c.b16 %v130, %v127
    %v202 = vunpack.c.l.b16 %v33
    %v203 = vunpack.c.h.b16 %v33
    %v204 = vunpack.c.l.b16 %v34
    %v205 = vunpack.c.h.b16 %v34
    %v206 = vunpack.c.l.b16 %v35
    %v207 = vunpack.c.h.b16 %v35
    %v208 = vunpack.c.l.b16 %v36
    %v209 = vunpack.c.h.b16 %v36
    %v210 = vunpack.c.l.b16 %v37
    %v211 = vunpack.c.h.b16 %v37
    %v212 = vunpack.c.l.b16 %v38
    %v213 = vunpack.c.h.b16 %v38
    %v214 = vunpack.c.l.b16 %v39
    %v215 = vunpack.c.h.b16 %v39
    %v216 = vunpack.c.l.b16 %v40
    %v217 = vunpack.c.h.b16 %v40
    %v218 = vunpack.c.l.b16 %v41
    %v219 = vunpack.c.h.b16 %v41
    %v220 = vunpack.c.l.b16 %v42
    %v221 = vunpack.c.h.b16 %v42
    %v222 = vunpack.c.l.b16 %v43
    %v223 = vunpack.c.h.b16 %v43
    %v224 = vunpack.c.l.b16 %v44
    %v225 = vunpack.c.h.b16 %v44
    %v226 = vunpack.c.l.b16 %v45
    %v227 = vunpack.c.h.b16 %v45
    %v228 = vunpack.c.l.b16 %v46
    %v229 = vunpack.c.h.b16 %v46
    %v230 = vunpack.c.l.b16 %v47
    %v231 = vunpack.c.h.b16 %v47
    %v232 = vunpack.c.l.b16 %v48
    %v233 = vunpack.c.h.b16 %v48
    %v234 = vunpack.c.l.b16 %v49
    %v235 = vunpack.c.h.b16 %v49
    %v236 = vunpack.c.l.b16 %v50
    %v237 = vunpack.c.h.b16 %v50
    %v238 = vunpack.c.l.b16 %v51
    %v239 = vunpack.c.h.b16 %v51
    %v240 = vunpack.c.l.b16 %v52
    %v241 = vunpack.c.h.b16 %v52
    %v242 = vunpack.c.l.b16 %v53
    %v243 = vunpack.c.h.b16 %v53
    %v244 = vunpack.c.l.b16 %v54
    %v245 = vunpack.c.h.b16 %v54
    %v246 = vunpack.c.l.b16 %v55
    %v247 = vunpack.c.h.b16 %v55
    %v248 = vunpack.c.l.b16 %v56
    %v249 = vunpack.c.h.b16 %v56
    %v250 = vunpack.c.l.b16 %v57
    %v251 = vunpack.c.h.b16 %v57
    %v252 = vunpack.c.l.b16 %v58
    %v253 = vunpack.c.h.b16 %v58
    %v254 = vunpack.c.l.b16 %v59
    %v255 = vunpack.c.h.b16 %v59
    %v256 = vunpack.c.l.b16 %v60
    %v257 = vunpack.c.h.b16 %v60
    %v258 = vunpack.c.l.b16 %v61
    %v259 = vunpack.c.h.b16 %v61
    %v260 = vunpack.c.l.b16 %v62
    %v261 = vunpack.c.h.b16 %v62
    %v262 = vunpack.c.l.b16 %v63
    %v263 = vunpack.c.h.b16 %v63
    %v264 = vunpack.c.l.b16 %v64
    %v265 = vunpack.c.h.b16 %v64
    %v266 = vunpack.c.l.b16 %v65
    %v267 = vunpack.c.h.b16 %v65
    %v268 = vunpack.c.l.b16 %v66
    %v269 = vunpack.c.h.b16 %v66
    %v270 = vunpack.c.l.b16 %v67
    %v271 = vunpack.c.h.b16 %v67
    %v272 = vunpack.c.l.b16 %v68
    %v273 = vunpack.c.h.b16 %v68
    %v274 = vunpack.c.l.b16 %v69
    %v275 = vunpack.c.h.b16 %v69
    %v276 = vunpack.c.l.b16 %v70
    %v277 = vunpack.c.h.b16 %v70
    %v278 = vunpack.c.l.b16 %v71
    %v279 = vunpack.c.h.b16 %v71
    %v280 = vunpack.c.l.b16 %v72
    %v281 = vunpack.c.h.b16 %v72
    %v282 = vunpack.c.l.b16 %v73
    %v283 = vunpack.c.h.b16 %v73
    %v284 = vunpack.c.l.b16 %v74
    %v285 = vunpack.c.h.b16 %v74
    %v286 = vunpack.c.l.b16 %v75
    %v287 = vunpack.c.h.b16 %v75
    %v288 = vunpack.c.l.b16 %v76
    %v289 = vunpack.c.h.b16 %v76
    %v290 = vunpack.c.l.b16 %v77
    %v291 = vunpack.c.h.b16 %v77
    %v292 = vunpack.c.l.b16 %v78
    %v293 = vunpack.c.h.b16 %v78
    %v294 = vunpack.c.l.b16 %v79
    %v295 = vunpack.c.h.b16 %v79
    %v296 = vunpack.c.l.b16 %v80
    %v297 = vunpack.c.h.b16 %v80
    %v298 = vunpack.c.l.b16 %v81
    %v299 = vunpack.c.h.b16 %v81
    %v300 = vunpack.c.l.b16 %v82
    %v301 = vunpack.c.h.b16 %v82
    %v302 = vunpack.c.l.b16 %v83
    %v303 = vunpack.c.h.b16 %v83
    %v304 = vunpack.c.l.b16 %v84
    %v305 = vunpack.c.h.b16 %v84
    %v306 = vunpack.c.l.b16 %v85
    %v307 = vunpack.c.h.b16 %v85
    %v308 = vunpack.c.l.b16 %v86
    %v309 = vunpack.c.h.b16 %v86
    %v310 = vunpack.c.l.b16 %v87
    %v311 = vunpack.c.h.b16 %v87
    %v312 = vunpack.c.l.b16 %v88
    %v313 = vunpack.c.h.b16 %v88
    %v314 = vunpack.c.l.b16 %v89
    %v315 = vunpack.c.h.b16 %v89
    %v316 = vunpack.c.l.b16 %v90
    %v317 = vunpack.c.h.b16 %v90
    %v318 = vunpack.c.l.b16 %v91
    %v319 = vunpack.c.h.b16 %v91
    %v320 = vunpack.c.l.b16 %v92
    %v321 = vunpack.c.h.b16 %v92
    %v322 = vunpack.c.l.b16 %v93
    %v323 = vunpack.c.h.b16 %v93
    %v324 = vunpack.c.l.b16 %v94
    %v325 = vunpack.c.h.b16 %v94
    %v326 = vunpack.c.l.b16 %v95
    %v327 = vunpack.c.h.b16 %v95
    %v328 = vunpack.c.l.b16 %v96
    %v329 = vunpack.c.h.b16 %v96
    %v330 = vunpack.c.l.b16 %v97
    %v331 = vunpack.c.h.b16 %v97
    %v332 = vunpack.c.l.b16 %v98
    %v333 = vunpack.c.h.b16 %v98
    %v334 = vpack.c.b16 %v206, %v202
    %v335 = vpack.c.b16 %v207, %v203
    %v336 = vpack.c.b16 %v208, %v204
    %v337 = vpack.c.b16 %v209, %v205
    %v338 = vpack.c.b16 %v214, %v210
    %v339 = vpack.c.b16 %v215, %v211
    %v340 = vpack.c.b16 %v216, %v212
    %v341 = vpack.c.b16 %v217, %v213
    %v342 = vpack.c.b16 %v222, %v218
    %v343 = vpack.c.b16 %v223, %v219
    %v344 = vpack.c.b16 %v224, %v220
    %v345 = vpack.c.b16 %v225, %v221
    %v346 = vpack.c.b16 %v230, %v226
    %v347 = vpack.c.b16 %v231, %v227
    %v348 = vpack.c.b16 %v232, %v228
    %v349 = vpack.c.b16 %v233, %v229
    %v350 = vpack.c.b16 %v238, %v234
    %v351 = vpack.c.b16 %v239, %v235
    %v352 = vpack.c.b16 %v240, %v236
    %v353 = vpack.c.b16 %v241, %v237
    %v354 = vpack.c.b16 %v246, %v242
    %v355 = vpack.c.b16 %v247, %v243
    %v356 = vpack.c.b16 %v248, %v244
    %v357 = vpack.c.b16 %v249, %v245
    %v358 = vpack.c.b16 %v254, %v250
    %v359 = vpack.c.b16 %v255, %v251
    %v360 = vpack.c.b16 %v256, %v252
    %v361 = vpack.c.b16 %v257, %v253
    %v362 = vpack.c.b16 %v262, %v258
    %v363 = vpack.c.b16 %v263, %v259
    %v364 = vpack.c.b16 %v264, %v260
    %v365 = vpack.c.b16 %v265, %v261
    %v366 = vpack.c.b16 %v270, %v266
    %v367 = vpack.c.b16 %v271, %v267
    %v368 = vpack.c.b16 %v272, %v268
    %v369 = vpack.c.b16 %v273, %v269
    %v370 = vpack.c.b16 %v278, %v274
    %v371 = vpack.c.b16 %v279, %v275
    %v372 = vpack.c.b16 %v280, %v276
    %v373 = vpack.c.b16 %v281, %v277
    %v374 = vpack.c.b16 %v286, %v282
    %v375 = vpack.c.b16 %v287, %v283
    %v376 = vpack.c.b16 %v288, %v284
    %v377 = vpack.c.b16 %v289, %v285
    %v378 = vpack.c.b16 %v294, %v290
    %v379 = vpack.c.b16 %v295, %v291
    %v380 = vpack.c.b16 %v296, %v292
    %v381 = vpack.c.b16 %v297, %v293
    %v382 = vpack.c.b16 %v302, %v298
    %v383 = vpack.c.b16 %v303, %v299
    %v384 = vpack.c.b16 %v304, %v300
    %v385 = vpack.c.b16 %v305, %v301
    %v386 = vpack.c.b16 %v310, %v306
    %v387 = vpack.c.b16 %v311, %v307
    %v388 = vpack.c.b16 %v312, %v308
    %v389 = vpack.c.b16 %v313, %v309
    %v390 = vpack.c.b16 %v318, %v314
    %v391 = vpack.c.b16 %v319, %v315
    %v392 = vpack.c.b16 %v320, %v316
    %v393 = vpack.c.b16 %v321, %v317
    %v394 = vpack.c.b16 %v326, %v322
    %v395 = vpack.c.b16 %v327, %v323
    %v396 = vpack.c.b16 %v328, %v324
    %v397 = vpack.c.b16 %v329, %v325
    %v398 = vpack.c.b16 %v330, %v330
    %v399 = vpack.c.b16 %v331, %v331
    %v400 = vpack.c.b16 %v332, %v332
    %v401 = vpack.c.b16 %v333, %v333
    %vm466 = vcmask 56320
    %v468 = vsel %vm466, %v133, 0
    %vm470 = vcmask 1042432
    %vm471 = vcmask 1043456
    %v472 = vsel %vm470, 4294967295, 65535
    %v473 = vsel %vm471, %v472, 0
    %v475 = vand.u32 %v398, %v473
    %v478 = vand.u32 %v399, %v473
    %v481 = vand.u32 %v400, %v473
    %v484 = vand.u32 %v401, %v473
    %486 = vmatprep.subr.bf16.mxu0 %v335
    %487 = vmatpush1.bf16.msra.mxu0 %v334
    %488 = vmatprep.subr.bf16.mxu0 %v339
    %489 = vmatpush1.bf16.msra.mxu0 %v338
    %490 = vmatprep.subr.bf16.mxu0 %v343
    %491 = vmatpush1.bf16.msra.mxu0 %v342
    %492 = vmatprep.subr.bf16.mxu0 %v347
    %493 = vmatpush1.bf16.msra.mxu0 %v346
    %494 = vmatprep.subr.bf16.mxu0 %v351
    %495 = vmatpush1.bf16.msra.mxu0 %v350
    %496 = vmatprep.subr.bf16.mxu0 %v355
    %497 = vmatpush1.bf16.msra.mxu0 %v354
    %498 = vmatprep.subr.bf16.mxu0 %v359
    %499 = vmatpush1.bf16.msra.mxu0 %v358
    %500 = vmatprep.subr.bf16.mxu0 %v363
    %501 = vmatpush1.bf16.msra.mxu0 %v362
    %502 = vmatprep.subr.bf16.mxu0 %v367
    %503 = vmatpush1.bf16.msra.mxu0 %v366
    %504 = vmatprep.subr.bf16.mxu0 %v371
    %505 = vmatpush1.bf16.msra.mxu0 %v370
    %506 = vmatprep.subr.bf16.mxu0 %v375
    %507 = vmatpush1.bf16.msra.mxu0 %v374
    %508 = vmatprep.subr.bf16.mxu0 %v379
    %509 = vmatpush1.bf16.msra.mxu0 %v378
    %510 = vmatprep.subr.bf16.mxu0 %v383
    %511 = vmatpush1.bf16.msra.mxu0 %v382
    %512 = vmatprep.subr.bf16.mxu0 %v387
    %513 = vmatpush1.bf16.msra.mxu0 %v386
    %514 = vmatprep.subr.bf16.mxu0 %v391
    %515 = vmatpush1.bf16.msra.mxu0 %v390
    %516 = vmatprep.subr.bf16.mxu0 %v395
    %517 = vmatpush1.bf16.msra.mxu0 %v394
    %518 = vmatprep.mubr.bf16.mxu0 %v132
    %519 = vmatmul.mubr.bf16.gmra.mrb[0].mxu0 %v131
    %v520 = vpop.f32.mrb[0].mxu0
    %v521 = vadd.f32 %v104, %v520
    %v522 = vpop.f32.mrb[0].mxu0
    %v523 = vadd.f32 %v108, %v522
    %v524 = vpop.f32.mrb[0].mxu0
    %v525 = vadd.f32 %v104, %v524
    %v526 = vpop.f32.mrb[0].mxu0
    %v527 = vadd.f32 %v108, %v526
    %528 = vdwg.mxu0
    %529 = vmatprep.subr.bf16.mxu0 %v478
    %530 = vmatpush1.bf16.msra.mxu0 %v475
    %531 = vmatprep.subr.bf16.mxu0 0
    %532 = vmatpush1.bf16.msra.mxu0 0
    %533 = vmatprep.subr.bf16.mxu0 0
    %534 = vmatpush1.bf16.msra.mxu0 0
    %535 = vmatprep.subr.bf16.mxu0 0
    %536 = vmatpush1.bf16.msra.mxu0 0
    %537 = vmatprep.subr.bf16.mxu0 0
    %538 = vmatpush1.bf16.msra.mxu0 0
    %539 = vmatprep.subr.bf16.mxu0 0
    %540 = vmatpush1.bf16.msra.mxu0 0
    %541 = vmatprep.subr.bf16.mxu0 0
    %542 = vmatpush1.bf16.msra.mxu0 0
    %543 = vmatprep.subr.bf16.mxu0 0
    %544 = vmatpush1.bf16.msra.mxu0 0
    %545 = vmatprep.subr.bf16.mxu0 0
    %546 = vmatpush1.bf16.msra.mxu0 0
    %547 = vmatprep.subr.bf16.mxu0 0
    %548 = vmatpush1.bf16.msra.mxu0 0
    %549 = vmatprep.subr.bf16.mxu0 0
    %550 = vmatpush1.bf16.msra.mxu0 0
    %551 = vmatprep.subr.bf16.mxu0 0
    %552 = vmatpush1.bf16.msra.mxu0 0
    %553 = vmatprep.subr.bf16.mxu0 0
    %554 = vmatpush1.bf16.msra.mxu0 0
    %555 = vmatprep.subr.bf16.mxu0 0
    %556 = vmatpush1.bf16.msra.mxu0 0
    %557 = vmatprep.subr.bf16.mxu0 0
    %558 = vmatpush1.bf16.msra.mxu0 0
    %559 = vmatprep.subr.bf16.mxu0 0
    %560 = vmatpush1.bf16.msra.mxu0 0
    %561 = vmatprep.mubr.bf16.mxu0 0
    %562 = vmatmul.mubr.bf16.gmra.mrb[0].mxu0 %v468
    %v563 = vpop.f32.mrb[0].mxu0
    %v564 = vadd.f32 %v521, %v563
    %v565 = vpop.f32.mrb[0].mxu0
    %v566 = vadd.f32 %v523, %v565
    %v567 = vpop.f32.mrb[0].mxu0
    %v568 = vadd.f32 %v525, %v567
    %v569 = vpop.f32.mrb[0].mxu0
    %v570 = vadd.f32 %v527, %v569
    %571 = vdwg.mxu0
    %572 = vmatprep.subr.bf16.mxu0 %v337
    %573 = vmatpush1.bf16.msra.mxu0 %v336
    %574 = vmatprep.subr.bf16.mxu0 %v341
    %575 = vmatpush1.bf16.msra.mxu0 %v340
    %576 = vmatprep.subr.bf16.mxu0 %v345
    %577 = vmatpush1.bf16.msra.mxu0 %v344
    %578 = vmatprep.subr.bf16.mxu0 %v349
    %579 = vmatpush1.bf16.msra.mxu0 %v348
    %580 = vmatprep.subr.bf16.mxu0 %v353
    %581 = vmatpush1.bf16.msra.mxu0 %v352
    %582 = vmatprep.subr.bf16.mxu0 %v357
    %583 = vmatpush1.bf16.msra.mxu0 %v356
    %584 = vmatprep.subr.bf16.mxu0 %v361
    %585 = vmatpush1.bf16.msra.mxu0 %v360
    %586 = vmatprep.subr.bf16.mxu0 %v365
    %587 = vmatpush1.bf16.msra.mxu0 %v364
    %588 = vmatprep.subr.bf16.mxu0 %v369
    %589 = vmatpush1.bf16.msra.mxu0 %v368
    %590 = vmatprep.subr.bf16.mxu0 %v373
    %591 = vmatpush1.bf16.msra.mxu0 %v372
    %592 = vmatprep.subr.bf16.mxu0 %v377
    %593 = vmatpush1.bf16.msra.mxu0 %v376
    %594 = vmatprep.subr.bf16.mxu0 %v381
    %595 = vmatpush1.bf16.msra.mxu0 %v380
    %596 = vmatprep.subr.bf16.mxu0 %v385
    %597 = vmatpush1.bf16.msra.mxu0 %v384
    %598 = vmatprep.subr.bf16.mxu0 %v389
    %599 = vmatpush1.bf16.msra.mxu0 %v388
    %600 = vmatprep.subr.bf16.mxu0 %v393
    %601 = vmatpush1.bf16.msra.mxu0 %v392
    %602 = vmatprep.subr.bf16.mxu0 %v397
    %603 = vmatpush1.bf16.msra.mxu0 %v396
    %604 = vmatprep.mubr.bf16.mxu0 %v132
    %605 = vmatmul.mubr.bf16.gmra.mrb[0].mxu0 %v131
    %v606 = vpop.f32.mrb[0].mxu0
    %v607 = vadd.f32 %v112, %v606
    %v608 = vpop.f32.mrb[0].mxu0
    %v609 = vadd.f32 %v116, %v608
    %v610 = vpop.f32.mrb[0].mxu0
    %v611 = vadd.f32 %v112, %v610
    %v612 = vpop.f32.mrb[0].mxu0
    %v613 = vadd.f32 %v116, %v612
    %614 = vdwg.mxu0
    %615 = vmatprep.subr.bf16.mxu0 %v484
    %616 = vmatpush1.bf16.msra.mxu0 %v481
    %617 = vmatprep.subr.bf16.mxu0 0
    %618 = vmatpush1.bf16.msra.mxu0 0
    %619 = vmatprep.subr.bf16.mxu0 0
    %620 = vmatpush1.bf16.msra.mxu0 0
    %621 = vmatprep.subr.bf16.mxu0 0
    %622 = vmatpush1.bf16.msra.mxu0 0
    %623 = vmatprep.subr.bf16.mxu0 0
    %624 = vmatpush1.bf16.msra.mxu0 0
    %625 = vmatprep.subr.bf16.mxu0 0
    %626 = vmatpush1.bf16.msra.mxu0 0
    %627 = vmatprep.subr.bf16.mxu0 0
    %628 = vmatpush1.bf16.msra.mxu0 0
    %629 = vmatprep.subr.bf16.mxu0 0
    %630 = vmatpush1.bf16.msra.mxu0 0
    %631 = vmatprep.subr.bf16.mxu0 0
    %632 = vmatpush1.bf16.msra.mxu0 0
    %633 = vmatprep.subr.bf16.mxu0 0
    %634 = vmatpush1.bf16.msra.mxu0 0
    %635 = vmatprep.subr.bf16.mxu0 0
    %636 = vmatpush1.bf16.msra.mxu0 0
    %637 = vmatprep.subr.bf16.mxu0 0
    %638 = vmatpush1.bf16.msra.mxu0 0
    %639 = vmatprep.subr.bf16.mxu0 0
    %640 = vmatpush1.bf16.msra.mxu0 0
    %641 = vmatprep.subr.bf16.mxu0 0
    %642 = vmatpush1.bf16.msra.mxu0 0
    %643 = vmatprep.subr.bf16.mxu0 0
    %644 = vmatpush1.bf16.msra.mxu0 0
    %645 = vmatprep.subr.bf16.mxu0 0
    %646 = vmatpush1.bf16.msra.mxu0 0
    %647 = vmatprep.mubr.bf16.mxu0 0
    %648 = vmatmul.mubr.bf16.gmra.mrb[0].mxu0 %v468
    %v649 = vpop.f32.mrb[0].mxu0
    %v650 = vadd.f32 %v607, %v649
    %v651 = vpop.f32.mrb[0].mxu0
    %v652 = vadd.f32 %v609, %v651
    %v653 = vpop.f32.mrb[0].mxu0
    %v654 = vadd.f32 %v611, %v653
    %v655 = vpop.f32.mrb[0].mxu0
    %v656 = vadd.f32 %v613, %v655
    %657 = vdwg.mxu0
    %658 = vst [vmem:[%s3] sm:$0xff] %v564
    %659 = vst [vmem:[%s3 + $0x8] sm:$0xff] %v566
    %660 = vst [vmem:[%s3 + $0x10] sm:$0xff] %v650
    %661 = vst [vmem:[%s3 + $0x18] sm:$0xff] %v652
    %662 = vst [vmem:[%s3 + $0x20] sm:$0xff] %v568
    %663 = vst [vmem:[%s3 + $0x28] sm:$0xff] %v570
    %664 = vst [vmem:[%s3 + $0x30] sm:$0xff] %v654
    %665 = vst [vmem:[%s3 + $0x38] sm:$0xff] %v656
    // Predicated region
    $region18: #{r2d2_mlp_forward.13} parent=1 // pred_check
      _
    $region19: #{r2d2_mlp_forward.13} parent=1 // pred_check_branch
      %667 = sbr.rel (0) target = $region21
    $region20: #{r2d2_mlp_forward.13} parent=1 // pred_region
      _
    $region21: #{r2d2_mlp_forward.13} parent=1 // pred_fallthru
      _
    // Predicated region
    $region22: #{r2d2_mlp_forward.13} parent=1 // pred_check
      _
    $region23: #{r2d2_mlp_forward.13} parent=1 // pred_check_branch
      %669 = sbr.rel (0) target = $region25
    $region24: #{r2d2_mlp_forward.13} parent=1 // pred_region
      _
    $region25: #{r2d2_mlp_forward.13} parent=1 // pred_fallthru
      _
    %670 = vsyncpa [#allocation3], 1

// kernel: r2d2_mlp_forward.14
$region0: #{r2d2_mlp_forward.14}
  #allocation0 [shape = 'u32[]', space=smem, size = 0x4, offset = 0x4, fixed_abs, tag = 'smem constant byte address 0x4 - core index']
  #allocation1 [shape = 'u32[144,128]{1,0:T(1,128)}', space=vmem, size = 0x12000, scoped, tag = 'internal scratch']
  #allocation2 [shape = 'f32[8,128]{1,0:T(8,128)}', space=vmem, size = 0x1000, scoped, tag = 'scratch operand']
  #allocation3 [shape = 'f32[8,128]{1,0:T(8,128)}', space=vmem, size = 0x1000, scoped, tag = 'scratch operand']
  %s0 = inlined_call_operand.vmem [shape: f32[8,8,512], index: 0, kind: input, shape index: {}]
  %s1 = inlined_call_operand.vmem [shape: bf16[128,512], index: 1, kind: input, shape index: {}]
  %s2 = inlined_call_operand.vmem [shape: f32[8,128], index: 2, kind: input, shape index: {}, may-alias: {2,3}]
  %s3 = inlined_call_operand.vmem [shape: f32[8,128], index: 3, kind: input, shape index: {}, may-alias: {2,3}]
  %s4 = inlined_call_operand.vmem [shape: f32[8,8,128], index: 4, kind: output, shape index: {0}]
  %s5 = inlined_call_operand.vmem [shape: f32[8,128], index: 5, kind: output, shape index: {1}]
  %s6 = inlined_call_operand.vmem [shape: f32[8,128], index: 6, kind: output, shape index: {2}]
  %7 = xla_tuple %s4, %s5, %s6
  %s8 = sld [smem:[#allocation0]]
  $region73: #{r2d2_mlp_forward.14} parent=0
    _
  %s10 = ssub.s32 1, %s8
  %s11 = scalar_select 0, %s10, %s8
  loop: start=0, step=1, limit=10
  $region2: #{r2d2_mlp_forward.14} parent=0 // loop_pre_header
    _
  $region3: #{r2d2_mlp_forward.14} parent=0 // loop_header
    %s13 = sphi 0, %s17
    %p14 = scmp.ge.s32.totalorder %s13, 10
    %s23 = sphi 0, %s25
    %s26 = sphi 0, %s23
    %s27 = sphi 0, %s26
    %s43 = sphi 0, %s27
    %s47 = sphi 0, %s47
    %s49 = sphi 0, %s47
    %s50 = sphi 0, %s49
    %s64 = sphi 0, %s50
    %s68 = sphi 0, %s68
    %s70 = sphi 0, %s68
    %s71 = sphi 0, %s70
    %s85 = sphi 0, %s71
    %s89 = sphi 0, %s89
    %s91 = sphi 0, %s89
    %s92 = sphi 0, %s91
    %s106 = sphi 0, %s92
    %s112 = sphi 0, %s114
    %s115 = sphi 0, %s112
    %s116 = sphi 0, %s115
    %s132 = sphi 0, %s116
    %s136 = sphi 0, %s136
    %s138 = sphi 0, %s136
    %s139 = sphi 0, %s138
    %s153 = sphi 0, %s139
    %s157 = sphi 0, %s157
    %s159 = sphi 0, %s157
    %s160 = sphi 0, %s159
    %s174 = sphi 0, %s160
  $region4: #{r2d2_mlp_forward.14} parent=0 // loop_header_branch
    %16 = sbr.rel (%p14) target = $region8
  $region5: #{r2d2_mlp_forward.14} parent=0 // loop_body
    %s18 = ssub.s32 %s13, 1
    %s19 = ssub.s32 %s13, 2
    %s20 = sadd.s32 %s13, 1
    %s21 = ssub.s32 %s13, %s20
    %p22 = scmp.eq.s32.totalorder %s21, 0
    %s24 = sadd.s32 %s23, 1
    %s25 = scalar_select %p22, %s23, %s24
    %p28 = pneg %p22
    %p29 = scmp.eq.s32.totalorder %s13, 7
    %p30 = por %p28, %p29
    %p31 = scmp.ne.s32.totalorder %s23, %s26
    %p32 = scmp.eq.s32.totalorder %s13, 0
    %p33 = por %p31, %p32
    %p34 = scmp.ne.s32.totalorder %s23, %s26
    %p35 = scmp.eq.s32.totalorder %s18, 7
    %p36 = por %p34, %p35
    %p37 = scmp.ne.s32.totalorder %s26, %s27
    %p38 = scmp.eq.s32.totalorder %s18, 0
    %p39 = por %p37, %p38
    %p40 = scmp.ne.s32.totalorder %s26, %s27
    %p41 = scmp.eq.s32.totalorder %s19, 7
    %p42 = por %p40, %p41
    %p44 = scmp.ne.s32.totalorder %s27, %s43
    %p45 = scmp.eq.s32.totalorder %s19, 0
    %p46 = por %p44, %p45
    %s48 = sadd.s32 %s47, 1
    %p51 = scmp.eq.s32.totalorder %s13, 7
    %p52 = scmp.ne.s32.totalorder %s47, %s49
    %p53 = scmp.eq.s32.totalorder %s13, 0
    %p54 = por %p52, %p53
    %p55 = scmp.ne.s32.totalorder %s47, %s49
    %p56 = scmp.eq.s32.totalorder %s18, 7
    %p57 = por %p55, %p56
    %p58 = scmp.ne.s32.totalorder %s49, %s50
    %p59 = scmp.eq.s32.totalorder %s18, 0
    %p60 = por %p58, %p59
    %p61 = scmp.ne.s32.totalorder %s49, %s50
    %p62 = scmp.eq.s32.totalorder %s19, 7
    %p63 = por %p61, %p62
    %p65 = scmp.ne.s32.totalorder %s50, %s64
    %p66 = scmp.eq.s32.totalorder %s19, 0
    %p67 = por %p65, %p66
    %s69 = sadd.s32 %s68, 1
    %p72 = scmp.eq.s32.totalorder %s13, 7
    %p73 = scmp.ne.s32.totalorder %s68, %s70
    %p74 = scmp.eq.s32.totalorder %s13, 0
    %p75 = por %p73, %p74
    %p76 = scmp.ne.s32.totalorder %s68, %s70
    %p77 = scmp.eq.s32.totalorder %s18, 7
    %p78 = por %p76, %p77
    %p79 = scmp.ne.s32.totalorder %s70, %s71
    %p80 = scmp.eq.s32.totalorder %s18, 0
    %p81 = por %p79, %p80
    %p82 = scmp.ne.s32.totalorder %s70, %s71
    %p83 = scmp.eq.s32.totalorder %s19, 7
    %p84 = por %p82, %p83
    %p86 = scmp.ne.s32.totalorder %s71, %s85
    %p87 = scmp.eq.s32.totalorder %s19, 0
    %p88 = por %p86, %p87
    %s90 = sadd.s32 %s89, 1
    %p93 = scmp.eq.s32.totalorder %s13, 7
    %p94 = scmp.ne.s32.totalorder %s89, %s91
    %p95 = scmp.eq.s32.totalorder %s13, 0
    %p96 = por %p94, %p95
    %p97 = scmp.ne.s32.totalorder %s89, %s91
    %p98 = scmp.eq.s32.totalorder %s18, 7
    %p99 = por %p97, %p98
    %p100 = scmp.ne.s32.totalorder %s91, %s92
    %p101 = scmp.eq.s32.totalorder %s18, 0
    %p102 = por %p100, %p101
    %p103 = scmp.ne.s32.totalorder %s91, %s92
    %p104 = scmp.eq.s32.totalorder %s19, 7
    %p105 = por %p103, %p104
    %p107 = scmp.ne.s32.totalorder %s92, %s106
    %p108 = scmp.eq.s32.totalorder %s19, 0
    %p109 = por %p107, %p108
    %s110 = ssub.s32 %s13, %s20
    %p111 = scmp.eq.s32.totalorder %s110, 0
    %s113 = sadd.s32 %s112, 1
    %s114 = scalar_select %p111, %s112, %s113
    %p117 = pneg %p111
    %p118 = scmp.eq.s32.totalorder %s13, 7
    %p119 = por %p117, %p118
    %p120 = scmp.ne.s32.totalorder %s112, %s115
    %p121 = scmp.eq.s32.totalorder %s13, 0
    %p122 = por %p120, %p121
    %p123 = scmp.ne.s32.totalorder %s112, %s115
    %p124 = scmp.eq.s32.totalorder %s18, 7
    %p125 = por %p123, %p124
    %p126 = scmp.ne.s32.totalorder %s115, %s116
    %p127 = scmp.eq.s32.totalorder %s18, 0
    %p128 = por %p126, %p127
    %p129 = scmp.ne.s32.totalorder %s115, %s116
    %p130 = scmp.eq.s32.totalorder %s19, 7
    %p131 = por %p129, %p130
    %p133 = scmp.ne.s32.totalorder %s116, %s132
    %p134 = scmp.eq.s32.totalorder %s19, 0
    %p135 = por %p133, %p134
    %s137 = sadd.s32 %s136, 1
    %p140 = scmp.eq.s32.totalorder %s13, 7
    %p141 = scmp.ne.s32.totalorder %s136, %s138
    %p142 = scmp.eq.s32.totalorder %s13, 0
    %p143 = por %p141, %p142
    %p144 = scmp.ne.s32.totalorder %s136, %s138
    %p145 = scmp.eq.s32.totalorder %s18, 7
    %p146 = por %p144, %p145
    %p147 = scmp.ne.s32.totalorder %s138, %s139
    %p148 = scmp.eq.s32.totalorder %s18, 0
    %p149 = por %p147, %p148
    %p150 = scmp.ne.s32.totalorder %s138, %s139
    %p151 = scmp.eq.s32.totalorder %s19, 7
    %p152 = por %p150, %p151
    %p154 = scmp.ne.s32.totalorder %s139, %s153
    %p155 = scmp.eq.s32.totalorder %s19, 0
    %p156 = por %p154, %p155
    %s158 = sadd.s32 %s157, 1
    %p161 = scmp.eq.s32.totalorder %s13, 7
    %p162 = scmp.ne.s32.totalorder %s157, %s159
    %p163 = scmp.eq.s32.totalorder %s13, 0
    %p164 = por %p162, %p163
    %p165 = scmp.ne.s32.totalorder %s157, %s159
    %p166 = scmp.eq.s32.totalorder %s18, 7
    %p167 = por %p165, %p166
    %p168 = scmp.ne.s32.totalorder %s159, %s160
    %p169 = scmp.eq.s32.totalorder %s18, 0
    %p170 = por %p168, %p169
    %p171 = scmp.ne.s32.totalorder %s159, %s160
    %p172 = scmp.eq.s32.totalorder %s19, 7
    %p173 = por %p171, %p172
    %p175 = scmp.ne.s32.totalorder %s160, %s174
    %p176 = scmp.eq.s32.totalorder %s19, 0
    %p177 = por %p175, %p176
    %p178 = scmp.le.s32.totalorder 1, %s13
    %p179 = scmp.lt.s32.totalorder %s13, 9
    %p180 = pnand %p178, %p179
    %p181 = pneg %p180
    // Predicated region
    $region9: #{r2d2_mlp_forward.14} parent=5 // pred_check
      _
    $region10: #{r2d2_mlp_forward.14} parent=5 // pred_check_branch
      %183 = sbr.rel (%p180) target = $region12
    $region11: #{r2d2_mlp_forward.14} parent=5 // pred_region
      %s184 = ssub.s32 %s13, 1
      // Predicated region
      $region13: #{r2d2_mlp_forward.14} parent=11 // pred_check
        %p185 = pneg %p60
      $region14: #{r2d2_mlp_forward.14} parent=11 // pred_check_branch
        %187 = sbr.rel (%p185) target = $region16
      $region15: #{r2d2_mlp_forward.14} parent=11 // pred_region
        _
      $region16: #{r2d2_mlp_forward.14} parent=11 // pred_fallthru
        _
      // Predicated region
      $region17: #{r2d2_mlp_forward.14} parent=11 // pred_check
        %p188 = pneg %p81
      $region18: #{r2d2_mlp_forward.14} parent=11 // pred_check_branch
        %190 = sbr.rel (%p188) target = $region20
      $region19: #{r2d2_mlp_forward.14} parent=11 // pred_region
        _
      $region20: #{r2d2_mlp_forward.14} parent=11 // pred_fallthru
        _
      // Predicated region
      $region21: #{r2d2_mlp_forward.14} parent=11 // pred_check
        %p191 = pneg %p102
      $region22: #{r2d2_mlp_forward.14} parent=11 // pred_check_branch
        %193 = sbr.rel (%p191) target = $region24
      $region23: #{r2d2_mlp_forward.14} parent=11 // pred_region
        _
      $region24: #{r2d2_mlp_forward.14} parent=11 // pred_fallthru
        _
    $region12: #{r2d2_mlp_forward.14} parent=5 // pred_fallthru
      _
    %p194 = scmp.lt.s32.totalorder %s13, 8
    // Predicated region
    $region25: #{r2d2_mlp_forward.14} parent=5 // pred_check
      %p195 = pneg %p194
    $region26: #{r2d2_mlp_forward.14} parent=5 // pred_check_branch
      %197 = sbr.rel (%p195) target = $region28
    $region27: #{r2d2_mlp_forward.14} parent=5 // pred_region
      // Predicated region
      $region29: #{r2d2_mlp_forward.14} parent=27 // pred_check
        %p198 = pneg %p33
      $region30: #{r2d2_mlp_forward.14} parent=27 // pred_check_branch
        %200 = sbr.rel (%p198) target = $region32
      $region31: #{r2d2_mlp_forward.14} parent=27 // pred_region
        %p201 = scmp.lt.s32.totalorder %s13, 7
        %s202 = scalar_select %p201, %s13, 7
        %s203 = smul.addr %s202, 4
        %s204 = smul.addr %s203, 8
        %s205 = scalar_lea.vmem %s0, %s204
      $region32: #{r2d2_mlp_forward.14} parent=27 // pred_fallthru
        _
    $region28: #{r2d2_mlp_forward.14} parent=5 // pred_fallthru
      _
    %p206 = scmp.le.s32.totalorder 1, %s13
    %p207 = scmp.lt.s32.totalorder %s13, 9
    %p208 = pnand %p206, %p207
    %p209 = pneg %p208
    // Predicated region
    $region33: #{r2d2_mlp_forward.14} parent=5 // pred_check
      _
    $region34: #{r2d2_mlp_forward.14} parent=5 // pred_check_branch
      %211 = sbr.rel (%p208) target = $region36
    $region35: #{r2d2_mlp_forward.14} parent=5 // pred_region
      %s212 = ssub.s32 %s13, 1
      %p213 = scmp.lt.s32.totalorder %s18, 7
      %s214 = scalar_select %p213, %s18, 7
      %s215 = smul.addr %s214, 4
      %s216 = smul.addr %s215, 8
      %s217 = scalar_lea.vmem %s0, %s216
      %p218 = pneg %p39
      %p219 = pneg %p36
      %p220 = pneg %p60
      %p221 = pneg %p57
      %p222 = pneg %p81
      %p223 = pneg %p78
      %p224 = pneg %p102
      %p225 = pneg %p99
      %p226 = pneg %p128
      %p227 = pneg %p125
      %p228 = scmp.lt.s32.totalorder %s18, 7
      %s229 = scalar_select %p228, %s18, 7
      %s230 = smul.addr %s229, 8
      %s231 = scalar_lea.vmem %s4, %s230
      %p232 = pneg %p149
      %p233 = pneg %p146
      %p234 = pneg %p170
      %p235 = pneg %p167
      %p236 = scmp.lt.s32.totalorder %s18, 7
      %s237 = scalar_select %p236, %s18, 7
      %s238 = smul.addr %s237, 4
      %s239 = smul.addr %s238, 8
      %s240 = scalar_lea.vmem %s0, %s239
      %p241 = scmp.lt.s32.totalorder %s18, 7
      %s242 = scalar_select %p241, %s18, 7
      %s243 = smul.addr %s242, 8
      %s244 = scalar_lea.vmem %s4, %s243
      %p246 = scmp.eq.s32.totalorder %s18, 0
      // Predicated region
      $region37: #{r2d2_mlp_forward.14} parent=35 // pred_check
        %p247 = pneg %p246
      $region38: #{r2d2_mlp_forward.14} parent=35 // pred_check_branch
        %249 = sbr.rel (%p247) target = $region40
      $region39: #{r2d2_mlp_forward.14} parent=35 // pred_region
        %v250 = vld [vmem:[%s2] sm:$0xff]
        %251 = vst [vmem:[#allocation2] sm:$0xff] %v250
        %v252 = vld [vmem:[%s3] sm:$0xff]
        %253 = vst [vmem:[#allocation3] sm:$0xff] %v252
      $region40: #{r2d2_mlp_forward.14} parent=35 // pred_fallthru
        _
      %v254 = vld [vmem:[%s240] sm:$0xff]
      %v255 = vld [vmem:[%s240 + $0x8] sm:$0xff]
      %v256 = vld [vmem:[%s240 + $0x10] sm:$0xff]
      %v257 = vld [vmem:[%s240 + $0x18] sm:$0xff]
      %v258 = vld [vmem:[#allocation2] sm:$0xff]
      %v259 = vpack.c.bf16 %v258, %v258
      %v260 = vld [vmem:[%s1] sm:$0xff]
      %v261 = vld [vmem:[%s1 + $0x8] sm:$0xff]
      %v262 = vld [vmem:[%s1 + $0x10] sm:$0xff]
      %v263 = vld [vmem:[%s1 + $0x18] sm:$0xff]
      %v264 = vld [vmem:[%s1 + $0x20] sm:$0xff]
      %v265 = vld [vmem:[%s1 + $0x28] sm:$0xff]
      %v266 = vld [vmem:[%s1 + $0x30] sm:$0xff]
      %v267 = vld [vmem:[%s1 + $0x38] sm:$0xff]
      %v268 = vld [vmem:[%s1 + $0x40] sm:$0xff]
      %v269 = vld [vmem:[%s1 + $0x48] sm:$0xff]
      %v270 = vld [vmem:[%s1 + $0x50] sm:$0xff]
      %v271 = vld [vmem:[%s1 + $0x58] sm:$0xff]
      %v272 = vld [vmem:[%s1 + $0x60] sm:$0xff]
      %v273 = vld [vmem:[%s1 + $0x68] sm:$0xff]
      %v274 = vld [vmem:[%s1 + $0x70] sm:$0xff]
      %v275 = vld [vmem:[%s1 + $0x78] sm:$0xff]
      %v276 = vld [vmem:[%s1 + $0x80] sm:$0xff]
      %v277 = vld [vmem:[%s1 + $0x88] sm:$0xff]
      %v278 = vld [vmem:[%s1 + $0x90] sm:$0xff]
      %v279 = vld [vmem:[%s1 + $0x98] sm:$0xff]
      %v280 = vld [vmem:[%s1 + $0xa0] sm:$0xff]
      %v281 = vld [vmem:[%s1 + $0xa8] sm:$0xff]
      %v282 = vld [vmem:[%s1 + $0xb0] sm:$0xff]
      %v283 = vld [vmem:[%s1 + $0xb8] sm:$0xff]
      %v284 = vld [vmem:[%s1 + $0xc0] sm:$0xff]
      %v285 = vld [vmem:[%s1 + $0xc8] sm:$0xff]
      %v286 = vld [vmem:[%s1 + $0xd0] sm:$0xff]
      %v287 = vld [vmem:[%s1 + $0xd8] sm:$0xff]
      %v288 = vld [vmem:[%s1 + $0xe0] sm:$0xff]
      %v289 = vld [vmem:[%s1 + $0xe8] sm:$0xff]
      %v290 = vld [vmem:[%s1 + $0xf0] sm:$0xff]
      %v291 = vld [vmem:[%s1 + $0xf8] sm:$0xff]
      %v324 = vunpack.c.l.b16 %v260
      %v325 = vunpack.c.h.b16 %v260
      %v326 = vunpack.c.l.b16 %v261
      %v327 = vunpack.c.h.b16 %v261
      %v328 = vunpack.c.l.b16 %v262
      %v329 = vunpack.c.h.b16 %v262
      %v330 = vunpack.c.l.b16 %v263
      %v331 = vunpack.c.h.b16 %v263
      %v332 = vunpack.c.l.b16 %v264
      %v333 = vunpack.c.h.b16 %v264
      %v334 = vunpack.c.l.b16 %v265
      %v335 = vunpack.c.h.b16 %v265
      %v336 = vunpack.c.l.b16 %v266
      %v337 = vunpack.c.h.b16 %v266
      %v338 = vunpack.c.l.b16 %v267
      %v339 = vunpack.c.h.b16 %v267
      %v340 = vunpack.c.l.b16 %v268
      %v341 = vunpack.c.h.b16 %v268
      %v342 = vunpack.c.l.b16 %v269
      %v343 = vunpack.c.h.b16 %v269
      %v344 = vunpack.c.l.b16 %v270
      %v345 = vunpack.c.h.b16 %v270
      %v346 = vunpack.c.l.b16 %v271
      %v347 = vunpack.c.h.b16 %v271
      %v348 = vunpack.c.l.b16 %v272
      %v349 = vunpack.c.h.b16 %v272
      %v350 = vunpack.c.l.b16 %v273
      %v351 = vunpack.c.h.b16 %v273
      %v352 = vunpack.c.l.b16 %v274
      %v353 = vunpack.c.h.b16 %v274
      %v354 = vunpack.c.l.b16 %v275
      %v355 = vunpack.c.h.b16 %v275
      %v356 = vunpack.c.l.b16 %v276
      %v357 = vunpack.c.h.b16 %v276
      %v358 = vunpack.c.l.b16 %v277
      %v359 = vunpack.c.h.b16 %v277
      %v360 = vunpack.c.l.b16 %v278
      %v361 = vunpack.c.h.b16 %v278
      %v362 = vunpack.c.l.b16 %v279
      %v363 = vunpack.c.h.b16 %v279
      %v364 = vunpack.c.l.b16 %v280
      %v365 = vunpack.c.h.b16 %v280
      %v366 = vunpack.c.l.b16 %v281
      %v367 = vunpack.c.h.b16 %v281
      %v368 = vunpack.c.l.b16 %v282
      %v369 = vunpack.c.h.b16 %v282
      %v370 = vunpack.c.l.b16 %v283
      %v371 = vunpack.c.h.b16 %v283
      %v372 = vunpack.c.l.b16 %v284
      %v373 = vunpack.c.h.b16 %v284
      %v374 = vunpack.c.l.b16 %v285
      %v375 = vunpack.c.h.b16 %v285
      %v376 = vunpack.c.l.b16 %v286
      %v377 = vunpack.c.h.b16 %v286
      %v378 = vunpack.c.l.b16 %v287
      %v379 = vunpack.c.h.b16 %v287
      %v380 = vunpack.c.l.b16 %v288
      %v381 = vunpack.c.h.b16 %v288
      %v382 = vunpack.c.l.b16 %v289
      %v383 = vunpack.c.h.b16 %v289
      %v384 = vunpack.c.l.b16 %v290
      %v385 = vunpack.c.h.b16 %v290
      %v386 = vunpack.c.l.b16 %v291
      %v387 = vunpack.c.h.b16 %v291
      %v388 = vpack.c.b16 %v328, %v324
      %v389 = vpack.c.b16 %v329, %v325
      %v390 = vpack.c.b16 %v330, %v326
      %v391 = vpack.c.b16 %v331, %v327
      %v392 = vpack.c.b16 %v336, %v332
      %v393 = vpack.c.b16 %v337, %v333
      %v394 = vpack.c.b16 %v338, %v334
      %v395 = vpack.c.b16 %v339, %v335
      %v396 = vpack.c.b16 %v344, %v340
      %v397 = vpack.c.b16 %v345, %v341
      %v398 = vpack.c.b16 %v346, %v342
      %v399 = vpack.c.b16 %v347, %v343
      %v400 = vpack.c.b16 %v352, %v348
      %v401 = vpack.c.b16 %v353, %v349
      %v402 = vpack.c.b16 %v354, %v350
      %v403 = vpack.c.b16 %v355, %v351
      %v404 = vpack.c.b16 %v360, %v356
      %v405 = vpack.c.b16 %v361, %v357
      %v406 = vpack.c.b16 %v362, %v358
      %v407 = vpack.c.b16 %v363, %v359
      %v408 = vpack.c.b16 %v368, %v364
      %v409 = vpack.c.b16 %v369, %v365
      %v410 = vpack.c.b16 %v370, %v366
      %v411 = vpack.c.b16 %v371, %v367
      %v412 = vpack.c.b16 %v376, %v372
      %v413 = vpack.c.b16 %v377, %v373
      %v414 = vpack.c.b16 %v378, %v374
      %v415 = vpack.c.b16 %v379, %v375
      %v416 = vpack.c.b16 %v384, %v380
      %v417 = vpack.c.b16 %v385, %v381
      %v418 = vpack.c.b16 %v386, %v382
      %v419 = vpack.c.b16 %v387, %v383
      %452 = vmatprep.subr.bf16.mxu0 %v389
      %453 = vmatpush1.bf16.msra.mxu0 %v388
      %454 = vmatprep.subr.bf16.mxu0 %v393
      %455 = vmatpush1.bf16.msra.mxu0 %v392
      %456 = vmatprep.subr.bf16.mxu0 %v397
      %457 = vmatpush1.bf16.msra.mxu0 %v396
      %458 = vmatprep.subr.bf16.mxu0 %v401
      %459 = vmatpush1.bf16.msra.mxu0 %v400
      %460 = vmatprep.subr.bf16.mxu0 %v405
      %461 = vmatpush1.bf16.msra.mxu0 %v404
      %462 = vmatprep.subr.bf16.mxu0 %v409
      %463 = vmatpush1.bf16.msra.mxu0 %v408
      %464 = vmatprep.subr.bf16.mxu0 %v413
      %465 = vmatpush1.bf16.msra.mxu0 %v412
      %466 = vmatprep.subr.bf16.mxu0 %v417
      %467 = vmatpush1.bf16.msra.mxu0 %v416
      %468 = vmatprep.subr.bf16.mxu0 0
      %469 = vmatpush1.bf16.msra.mxu0 0
      %470 = vmatprep.subr.bf16.mxu0 0
      %471 = vmatpush1.bf16.msra.mxu0 0
      %472 = vmatprep.subr.bf16.mxu0 0
      %473 = vmatpush1.bf16.msra.mxu0 0
      %474 = vmatprep.subr.bf16.mxu0 0
      %475 = vmatpush1.bf16.msra.mxu0 0
      %476 = vmatprep.subr.bf16.mxu0 0
      %477 = vmatpush1.bf16.msra.mxu0 0
      %478 = vmatprep.subr.bf16.mxu0 0
      %479 = vmatpush1.bf16.msra.mxu0 0
      %480 = vmatprep.subr.bf16.mxu0 0
      %481 = vmatpush1.bf16.msra.mxu0 0
      %482 = vmatprep.subr.bf16.mxu0 0
      %483 = vmatpush1.bf16.msra.mxu0 0
      %484 = vmatprep.mubr.bf16.mxu0 0
      %485 = vmatmul.mubr.bf16.gmra.mrb[0].mxu0 %v259
      %v486 = vpop.f32.mrb[0].mxu0
      %v487 = vadd.f32 0.0, %v486
      %v488 = vpop.f32.mrb[0].mxu0
      %v489 = vadd.f32 0.0, %v488
      %v490 = vpop.f32.mrb[0].mxu0
      %v491 = vpop.f32.mrb[0].mxu0
      %492 = vdwg.mxu0
      %493 = vmatprep.subr.bf16.mxu0 %v391
      %494 = vmatpush1.bf16.msra.mxu0 %v390
      %495 = vmatprep.subr.bf16.mxu0 %v395
      %496 = vmatpush1.bf16.msra.mxu0 %v394
      %497 = vmatprep.subr.bf16.mxu0 %v399
      %498 = vmatpush1.bf16.msra.mxu0 %v398
      %499 = vmatprep.subr.bf16.mxu0 %v403
      %500 = vmatpush1.bf16.msra.mxu0 %v402
      %501 = vmatprep.subr.bf16.mxu0 %v407
      %502 = vmatpush1.bf16.msra.mxu0 %v406
      %503 = vmatprep.subr.bf16.mxu0 %v411
      %504 = vmatpush1.bf16.msra.mxu0 %v410
      %505 = vmatprep.subr.bf16.mxu0 %v415
      %506 = vmatpush1.bf16.msra.mxu0 %v414
      %507 = vmatprep.subr.bf16.mxu0 %v419
      %508 = vmatpush1.bf16.msra.mxu0 %v418
      %509 = vmatprep.subr.bf16.mxu0 0
      %510 = vmatpush1.bf16.msra.mxu0 0
      %511 = vmatprep.subr.bf16.mxu0 0
      %512 = vmatpush1.bf16.msra.mxu0 0
      %513 = vmatprep.subr.bf16.mxu0 0
      %514 = vmatpush1.bf16.msra.mxu0 0
      %515 = vmatprep.subr.bf16.mxu0 0
      %516 = vmatpush1.bf16.msra.mxu0 0
      %517 = vmatprep.subr.bf16.mxu0 0
      %518 = vmatpush1.bf16.msra.mxu0 0
      %519 = vmatprep.subr.bf16.mxu0 0
      %520 = vmatpush1.bf16.msra.mxu0 0
      %521 = vmatprep.subr.bf16.mxu0 0
      %522 = vmatpush1.bf16.msra.mxu0 0
      %523 = vmatprep.subr.bf16.mxu0 0
      %524 = vmatpush1.bf16.msra.mxu0 0
      %525 = vmatprep.mubr.bf16.mxu0 0
      %526 = vmatmul.mubr.bf16.gmra.mrb[0].mxu0 %v259
      %v527 = vpop.f32.mrb[0].mxu0
      %v528 = vadd.f32 0.0, %v527
      %v529 = vpop.f32.mrb[0].mxu0
      %v530 = vadd.f32 0.0, %v529
      %v531 = vpop.f32.mrb[0].mxu0
      %v532 = vpop.f32.mrb[0].mxu0
      %533 = vdwg.mxu0
      %v534 = vadd.f32 %v254, %v487
      %v535 = vadd.f32 %v255, %v489
      %v536 = vadd.f32 %v256, %v528
      %v537 = vadd.f32 %v257, %v530
      %v538 = vxor.u32 %v534, 2147483648
      %v539 = vmul.f32 %v538, 1.442695
      %v540 = vpow.pop %v539
      %v541 = vadd.f32 %v540, 1.0
      %v542 = vrcp.pop %v541
      %v543 = vmul.f32 1.0, %v542
      %v544 = vxor.u32 %v535, 2147483648
      %v545 = vmul.f32 %v544, 1.442695
      %v546 = vpow.pop %v545
      %v547 = vadd.f32 %v546, 1.0
      %v548 = vrcp.pop %v547
      %v549 = vmul.f32 1.0, %v548
      %v550 = vtanh.pop %v536
      %v551 = vxor.u32 %v537, 2147483648
      %v552 = vmul.f32 %v551, 1.442695
      %v553 = vpow.pop %v552
      %v554 = vadd.f32 %v553, 1.0
      %v555 = vrcp.pop %v554
      %v556 = vmul.f32 1.0, %v555
      %v557 = vld [vmem:[#allocation3] sm:$0xff]
      %v558 = vmul.f32 %v549, %v557
      %v559 = vmul.f32 %v543, %v550
      %v560 = vadd.f32 %v558, %v559
      %v561 = vtanh.pop %v560
      %v562 = vmul.f32 %v556, %v561
      %563 = vst [vmem:[#allocation3] sm:$0xff] %v560
      %564 = vst [vmem:[#allocation2] sm:$0xff] %v562
      %565 = vst [vmem:[%s244] sm:$0xff] %v562
      %p566 = scmp.eq.s32.totalorder %s18, 7
      // Predicated region
      $region41: #{r2d2_mlp_forward.14} parent=35 // pred_check
        %p567 = pneg %p566
      $region42: #{r2d2_mlp_forward.14} parent=35 // pred_check_branch
        %569 = sbr.rel (%p567) target = $region44
      $region43: #{r2d2_mlp_forward.14} parent=35 // pred_region
        %570 = vst [vmem:[%s5] sm:$0xff] %v562
        %571 = vst [vmem:[%s6] sm:$0xff] %v560
      $region44: #{r2d2_mlp_forward.14} parent=35 // pred_fallthru
        _
      %p572 = scmp.lt.s32.totalorder %s18, 7
      %s573 = scalar_select %p572, %s18, 7
      %s574 = smul.addr %s573, 8
      %s575 = scalar_lea.vmem %s4, %s574
      // Predicated region
      $region45: #{r2d2_mlp_forward.14} parent=35 // pred_check
        %p576 = pneg %p125
      $region46: #{r2d2_mlp_forward.14} parent=35 // pred_check_branch
        %578 = sbr.rel (%p576) target = $region48
      $region47: #{r2d2_mlp_forward.14} parent=35 // pred_region
        _
      $region48: #{r2d2_mlp_forward.14} parent=35 // pred_fallthru
        _
      // Predicated region
      $region49: #{r2d2_mlp_forward.14} parent=35 // pred_check
        %p579 = pneg %p146
      $region50: #{r2d2_mlp_forward.14} parent=35 // pred_check_branch
        %581 = sbr.rel (%p579) target = $region52
      $region51: #{r2d2_mlp_forward.14} parent=35 // pred_region
        _
      $region52: #{r2d2_mlp_forward.14} parent=35 // pred_fallthru
        _
      // Predicated region
      $region53: #{r2d2_mlp_forward.14} parent=35 // pred_check
        %p582 = pneg %p167
      $region54: #{r2d2_mlp_forward.14} parent=35 // pred_check_branch
        %584 = sbr.rel (%p582) target = $region56
      $region55: #{r2d2_mlp_forward.14} parent=35 // pred_region
        _
      $region56: #{r2d2_mlp_forward.14} parent=35 // pred_fallthru
        _
      // Predicated region
      $region57: #{r2d2_mlp_forward.14} parent=35 // pred_check
        %p585 = pneg %p146
      $region58: #{r2d2_mlp_forward.14} parent=35 // pred_check_branch
        %587 = sbr.rel (%p585) target = $region60
      $region59: #{r2d2_mlp_forward.14} parent=35 // pred_region
        _
      $region60: #{r2d2_mlp_forward.14} parent=35 // pred_fallthru
        _
      // Predicated region
      $region61: #{r2d2_mlp_forward.14} parent=35 // pred_check
        %p588 = pneg %p167
      $region62: #{r2d2_mlp_forward.14} parent=35 // pred_check_branch
        %590 = sbr.rel (%p588) target = $region64
      $region63: #{r2d2_mlp_forward.14} parent=35 // pred_region
        _
      $region64: #{r2d2_mlp_forward.14} parent=35 // pred_fallthru
        _
    $region36: #{r2d2_mlp_forward.14} parent=5 // pred_fallthru
      _
    %p591 = scmp.le.s32.totalorder 2, %s13
    // Predicated region
    $region65: #{r2d2_mlp_forward.14} parent=5 // pred_check
      %p592 = pneg %p591
    $region66: #{r2d2_mlp_forward.14} parent=5 // pred_check_branch
      %594 = sbr.rel (%p592) target = $region68
    $region67: #{r2d2_mlp_forward.14} parent=5 // pred_region
      %s595 = ssub.s32 %s13, 2
      // Predicated region
      $region69: #{r2d2_mlp_forward.14} parent=67 // pred_check
        %p596 = pneg %p131
      $region70: #{r2d2_mlp_forward.14} parent=67 // pred_check_branch
        %598 = sbr.rel (%p596) target = $region72
      $region71: #{r2d2_mlp_forward.14} parent=67 // pred_region
        %p599 = scmp.lt.s32.totalorder %s19, 7
        %s600 = scalar_select %p599, %s19, 7
        %s601 = smul.addr %s600, 8
        %s602 = scalar_lea.vmem %s4, %s601
      $region72: #{r2d2_mlp_forward.14} parent=67 // pred_fallthru
        _
    $region68: #{r2d2_mlp_forward.14} parent=5 // pred_fallthru
      _
  $region6: #{r2d2_mlp_forward.14} parent=0 // loop_footer
    %s17 = sadd.s32 1, %s13
  $region7: #{r2d2_mlp_forward.14} parent=0 // loop_footer_branch
    %12 = sbr.rel target = $region3
  $region8: #{r2d2_mlp_forward.14} parent=0 // loop_exit
    _

// kernel: r2d2_mlp_forward.18
$region0: #{r2d2_mlp_forward.18}
  #allocation0 [shape = 'u32[]', space=smem, size = 0x4, offset = 0x4, fixed_abs, tag = 'smem constant byte address 0x4 - core index']
  #allocation1 [shape = 'u32[144,128]{1,0:T(1,128)}', space=vmem, size = 0x12000, scoped, tag = 'internal scratch']
  %s0 = inlined_call_operand.vmem [shape: bf16[16,128], index: 0, kind: input, shape index: {}]
  %s1 = inlined_call_operand.vmem [shape: bf16[128,128], index: 1, kind: input, shape index: {}]
  %s2 = inlined_call_operand.vmem [shape: f32[1,128], index: 2, kind: input, shape index: {}]
  %s3 = inlined_call_operand.vmem [shape: bf16[16,128], index: 3, kind: output, shape index: {}]
  %s4 = sld [smem:[#allocation0]]
  $region22: #{r2d2_mlp_forward.18} parent=0
    _
  %s6 = ssub.s32 1, %s4
  %s7 = scalar_select 0, %s6, %s4
  // Predicated region
  $region2: #{r2d2_mlp_forward.18} parent=0 // pred_check
    _
  $region3: #{r2d2_mlp_forward.18} parent=0 // pred_check_branch
    %9 = sbr.rel (0) target = $region5
  $region4: #{r2d2_mlp_forward.18} parent=0 // pred_region
    _
  $region5: #{r2d2_mlp_forward.18} parent=0 // pred_fallthru
    _
  // Predicated region
  $region6: #{r2d2_mlp_forward.18} parent=0 // pred_check
    _
  $region7: #{r2d2_mlp_forward.18} parent=0 // pred_check_branch
    %11 = sbr.rel (0) target = $region9
  $region8: #{r2d2_mlp_forward.18} parent=0 // pred_region
    _
  $region9: #{r2d2_mlp_forward.18} parent=0 // pred_fallthru
    _
  // Predicated region
  $region10: #{r2d2_mlp_forward.18} parent=0 // pred_check
    _
  $region11: #{r2d2_mlp_forward.18} parent=0 // pred_check_branch
    %13 = sbr.rel (0) target = $region13
  $region12: #{r2d2_mlp_forward.18} parent=0 // pred_region
    _
  $region13: #{r2d2_mlp_forward.18} parent=0 // pred_fallthru
    _
  %v15 = vld [vmem:[%s0] sm:$0xf]
  %v16 = vld [vmem:[%s0 + $0x4] sm:$0xf]
  %v17 = vld [vmem:[%s1] sm:$0xf]
  %v18 = vld [vmem:[%s1 + $0x4] sm:$0xf]
  %v19 = vld [vmem:[%s1 + $0x8] sm:$0xf]
  %v20 = vld [vmem:[%s1 + $0xc] sm:$0xf]
  %v21 = vld [vmem:[%s1 + $0x10] sm:$0xf]
  %v22 = vld [vmem:[%s1 + $0x14] sm:$0xf]
  %v23 = vld [vmem:[%s1 + $0x18] sm:$0xf]
  %v24 = vld [vmem:[%s1 + $0x1c] sm:$0xf]
  %v25 = vld [vmem:[%s1 + $0x20] sm:$0xf]
  %v26 = vld [vmem:[%s1 + $0x24] sm:$0xf]
  %v27 = vld [vmem:[%s1 + $0x28] sm:$0xf]
  %v28 = vld [vmem:[%s1 + $0x2c] sm:$0xf]
  %v29 = vld [vmem:[%s1 + $0x30] sm:$0xf]
  %v30 = vld [vmem:[%s1 + $0x34] sm:$0xf]
  %v31 = vld [vmem:[%s1 + $0x38] sm:$0xf]
  %v32 = vld [vmem:[%s1 + $0x3c] sm:$0xf]
  %v33 = vld [vmem:[%s2] sm:$0x1]
  %v35 = vlaneseq
  %v36 = vshrl.u32 %v35, 7
  %v37 = vsub.s32 0, %v36
  %v38 = vrot.slane %v33, %v37
  %v42 = vunpack.c.l.b16 %v15
  %v43 = vunpack.c.l.b16 %v16
  %v44 = vpack.c.b16 %v43, %v42
  %v62 = vunpack.c.l.b16 %v17
  %v63 = vunpack.c.l.b16 %v18
  %v64 = vunpack.c.l.b16 %v19
  %v65 = vunpack.c.l.b16 %v20
  %v66 = vunpack.c.l.b16 %v21
  %v67 = vunpack.c.l.b16 %v22
  %v68 = vunpack.c.l.b16 %v23
  %v69 = vunpack.c.l.b16 %v24
  %v70 = vunpack.c.l.b16 %v25
  %v71 = vunpack.c.l.b16 %v26
  %v72 = vunpack.c.l.b16 %v27
  %v73 = vunpack.c.l.b16 %v28
  %v74 = vunpack.c.l.b16 %v29
  %v75 = vunpack.c.l.b16 %v30
  %v76 = vunpack.c.l.b16 %v31
  %v77 = vunpack.c.l.b16 %v32
  %v78 = vpack.c.b16 %v63, %v62
  %v79 = vpack.c.b16 %v65, %v64
  %v80 = vpack.c.b16 %v67, %v66
  %v81 = vpack.c.b16 %v69, %v68
  %v82 = vpack.c.b16 %v71, %v70
  %v83 = vpack.c.b16 %v73, %v72
  %v84 = vpack.c.b16 %v75, %v74
  %v85 = vpack.c.b16 %v77, %v76
  %94 = vmatprep.subr.bf16.mxu0 0
  %95 = vmatpush1.bf16.msra.mxu0 %v78
  %96 = vmatprep.subr.bf16.mxu0 0
  %97 = vmatpush1.bf16.msra.mxu0 %v79
  %98 = vmatprep.subr.bf16.mxu0 0
  %99 = vmatpush1.bf16.msra.mxu0 %v80
  %100 = vmatprep.subr.bf16.mxu0 0
  %101 = vmatpush1.bf16.msra.mxu0 %v81
  %102 = vmatprep.subr.bf16.mxu0 0
  %103 = vmatpush1.bf16.msra.mxu0 %v82
  %104 = vmatprep.subr.bf16.mxu0 0
  %105 = vmatpush1.bf16.msra.mxu0 %v83
  %106 = vmatprep.subr.bf16.mxu0 0
  %107 = vmatpush1.bf16.msra.mxu0 %v84
  %108 = vmatprep.subr.bf16.mxu0 0
  %109 = vmatpush1.bf16.msra.mxu0 %v85
  %110 = vmatprep.subr.bf16.mxu0 0
  %111 = vmatpush1.bf16.msra.mxu0 0
  %112 = vmatprep.subr.bf16.mxu0 0
  %113 = vmatpush1.bf16.msra.mxu0 0
  %114 = vmatprep.subr.bf16.mxu0 0
  %115 = vmatpush1.bf16.msra.mxu0 0
  %116 = vmatprep.subr.bf16.mxu0 0
  %117 = vmatpush1.bf16.msra.mxu0 0
  %118 = vmatprep.subr.bf16.mxu0 0
  %119 = vmatpush1.bf16.msra.mxu0 0
  %120 = vmatprep.subr.bf16.mxu0 0
  %121 = vmatpush1.bf16.msra.mxu0 0
  %122 = vmatprep.subr.bf16.mxu0 0
  %123 = vmatpush1.bf16.msra.mxu0 0
  %124 = vmatprep.subr.bf16.mxu0 0
  %125 = vmatpush1.bf16.msra.mxu0 0
  %126 = vmatprep.mubr.bf16.mxu0 0
  %127 = vmatmul.mubr.bf16.gmra.mrb[0].mxu0 %v44
  %v128 = vpop.f32.mrb[0].mxu0
  %v129 = vadd.f32 %v38, %v128
  %v130 = vpop.f32.mrb[0].mxu0
  %v131 = vpop.f32.mrb[0].mxu0
  %v132 = vadd.f32 %v38, %v131
  %v133 = vpop.f32.mrb[0].mxu0
  %134 = vdwg.mxu0
  %v135 = vmax.f32 %v129, 0.0
  %v136 = vmax.f32 %v132, 0.0
  %v137 = vpack.c.bf16 %v136, %v135
  %v139 = vunpack.c.l.b16 %v137
  %v140 = vunpack.c.h.b16 %v137
  %v141 = vpack.c.b16 %v139, %v139
  %v142 = vpack.c.b16 %v140, %v140
  %145 = vst [vmem:[%s3] sm:$0xf] %v141
  %146 = vst [vmem:[%s3 + $0x4] sm:$0xf] %v142
  // Predicated region
  $region14: #{r2d2_mlp_forward.18} parent=0 // pred_check
    _
  $region15: #{r2d2_mlp_forward.18} parent=0 // pred_check_branch
    %148 = sbr.rel (0) target = $region17
  $region16: #{r2d2_mlp_forward.18} parent=0 // pred_region
    _
  $region17: #{r2d2_mlp_forward.18} parent=0 // pred_fallthru
    _
  // Predicated region
  $region18: #{r2d2_mlp_forward.18} parent=0 // pred_check
    _
  $region19: #{r2d2_mlp_forward.18} parent=0 // pred_check_branch
    %150 = sbr.rel (0) target = $region21
  $region20: #{r2d2_mlp_forward.18} parent=0 // pred_region
    _
  $region21: #{r2d2_mlp_forward.18} parent=0 // pred_fallthru
    _

// kernel: r2d2_mlp_forward.19
$region0: #{r2d2_mlp_forward.19}
  #allocation0 [shape = 'u32[]', space=smem, size = 0x4, offset = 0x4, fixed_abs, tag = 'smem constant byte address 0x4 - core index']
  #allocation1 [shape = 'u32[144,128]{1,0:T(1,128)}', space=vmem, size = 0x12000, scoped, tag = 'internal scratch']
  %s0 = inlined_call_operand.vmem [shape: bf16[16,256], index: 0, kind: input, shape index: {}]
  %s1 = inlined_call_operand.vmem [shape: bf16[256,128], index: 1, kind: input, shape index: {}]
  %s2 = inlined_call_operand.vmem [shape: f32[1,128], index: 2, kind: input, shape index: {}]
  %s3 = inlined_call_operand.vmem [shape: bf16[16,128], index: 3, kind: output, shape index: {}]
  %s4 = sld [smem:[#allocation0]]
  $region22: #{r2d2_mlp_forward.19} parent=0
    _
  %s6 = ssub.s32 1, %s4
  %s7 = scalar_select 0, %s6, %s4
  // Predicated region
  $region2: #{r2d2_mlp_forward.19} parent=0 // pred_check
    _
  $region3: #{r2d2_mlp_forward.19} parent=0 // pred_check_branch
    %9 = sbr.rel (0) target = $region5
  $region4: #{r2d2_mlp_forward.19} parent=0 // pred_region
    _
  $region5: #{r2d2_mlp_forward.19} parent=0 // pred_fallthru
    _
  // Predicated region
  $region6: #{r2d2_mlp_forward.19} parent=0 // pred_check
    _
  $region7: #{r2d2_mlp_forward.19} parent=0 // pred_check_branch
    %11 = sbr.rel (0) target = $region9
  $region8: #{r2d2_mlp_forward.19} parent=0 // pred_region
    _
  $region9: #{r2d2_mlp_forward.19} parent=0 // pred_fallthru
    _
  // Predicated region
  $region10: #{r2d2_mlp_forward.19} parent=0 // pred_check
    _
  $region11: #{r2d2_mlp_forward.19} parent=0 // pred_check_branch
    %13 = sbr.rel (0) target = $region13
  $region12: #{r2d2_mlp_forward.19} parent=0 // pred_region
    _
  $region13: #{r2d2_mlp_forward.19} parent=0 // pred_fallthru
    _
  %v15 = vld [vmem:[%s0] sm:$0xff]
  %v16 = vld [vmem:[%s0 + $0x8] sm:$0xff]
  %v17 = vld [vmem:[%s1] sm:$0xf]
  %v18 = vld [vmem:[%s1 + $0x4] sm:$0xf]
  %v19 = vld [vmem:[%s1 + $0x8] sm:$0xf]
  %v20 = vld [vmem:[%s1 + $0xc] sm:$0xf]
  %v21 = vld [vmem:[%s1 + $0x10] sm:$0xf]
  %v22 = vld [vmem:[%s1 + $0x14] sm:$0xf]
  %v23 = vld [vmem:[%s1 + $0x18] sm:$0xf]
  %v24 = vld [vmem:[%s1 + $0x1c] sm:$0xf]
  %v25 = vld [vmem:[%s1 + $0x20] sm:$0xf]
  %v26 = vld [vmem:[%s1 + $0x24] sm:$0xf]
  %v27 = vld [vmem:[%s1 + $0x28] sm:$0xf]
  %v28 = vld [vmem:[%s1 + $0x2c] sm:$0xf]
  %v29 = vld [vmem:[%s1 + $0x30] sm:$0xf]
  %v30 = vld [vmem:[%s1 + $0x34] sm:$0xf]
  %v31 = vld [vmem:[%s1 + $0x38] sm:$0xf]
  %v32 = vld [vmem:[%s1 + $0x3c] sm:$0xf]
  %v33 = vld [vmem:[%s1 + $0x40] sm:$0xf]
  %v34 = vld [vmem:[%s1 + $0x44] sm:$0xf]
  %v35 = vld [vmem:[%s1 + $0x48] sm:$0xf]
  %v36 = vld [vmem:[%s1 + $0x4c] sm:$0xf]
  %v37 = vld [vmem:[%s1 + $0x50] sm:$0xf]
  %v38 = vld [vmem:[%s1 + $0x54] sm:$0xf]
  %v39 = vld [vmem:[%s1 + $0x58] sm:$0xf]
  %v40 = vld [vmem:[%s1 + $0x5c] sm:$0xf]
  %v41 = vld [vmem:[%s1 + $0x60] sm:$0xf]
  %v42 = vld [vmem:[%s1 + $0x64] sm:$0xf]
  %v43 = vld [vmem:[%s1 + $0x68] sm:$0xf]
  %v44 = vld [vmem:[%s1 + $0x6c] sm:$0xf]
  %v45 = vld [vmem:[%s1 + $0x70] sm:$0xf]
  %v46 = vld [vmem:[%s1 + $0x74] sm:$0xf]
  %v47 = vld [vmem:[%s1 + $0x78] sm:$0xf]
  %v48 = vld [vmem:[%s1 + $0x7c] sm:$0xf]
  %v49 = vld [vmem:[%s2] sm:$0x1]
  %v51 = vlaneseq
  %v52 = vshrl.u32 %v51, 7
  %v53 = vsub.s32 0, %v52
  %v54 = vrot.slane %v49, %v53
  %v58 = vunpack.c.l.b16 %v15
  %v59 = vunpack.c.h.b16 %v15
  %v60 = vunpack.c.l.b16 %v16
  %v61 = vunpack.c.h.b16 %v16
  %v62 = vpack.c.b16 %v60, %v58
  %v63 = vpack.c.b16 %v61, %v59
  %v98 = vunpack.c.l.b16 %v17
  %v99 = vunpack.c.l.b16 %v18
  %v100 = vunpack.c.l.b16 %v19
  %v101 = vunpack.c.l.b16 %v20
  %v102 = vunpack.c.l.b16 %v21
  %v103 = vunpack.c.l.b16 %v22
  %v104 = vunpack.c.l.b16 %v23
  %v105 = vunpack.c.l.b16 %v24
  %v106 = vunpack.c.l.b16 %v25
  %v107 = vunpack.c.l.b16 %v26
  %v108 = vunpack.c.l.b16 %v27
  %v109 = vunpack.c.l.b16 %v28
  %v110 = vunpack.c.l.b16 %v29
  %v111 = vunpack.c.l.b16 %v30
  %v112 = vunpack.c.l.b16 %v31
  %v113 = vunpack.c.l.b16 %v32
  %v114 = vunpack.c.l.b16 %v33
  %v115 = vunpack.c.l.b16 %v34
  %v116 = vunpack.c.l.b16 %v35
  %v117 = vunpack.c.l.b16 %v36
  %v118 = vunpack.c.l.b16 %v37
  %v119 = vunpack.c.l.b16 %v38
  %v120 = vunpack.c.l.b16 %v39
  %v121 = vunpack.c.l.b16 %v40
  %v122 = vunpack.c.l.b16 %v41
  %v123 = vunpack.c.l.b16 %v42
  %v124 = vunpack.c.l.b16 %v43
  %v125 = vunpack.c.l.b16 %v44
  %v126 = vunpack.c.l.b16 %v45
  %v127 = vunpack.c.l.b16 %v46
  %v128 = vunpack.c.l.b16 %v47
  %v129 = vunpack.c.l.b16 %v48
  %v130 = vpack.c.b16 %v99, %v98
  %v131 = vpack.c.b16 %v101, %v100
  %v132 = vpack.c.b16 %v103, %v102
  %v133 = vpack.c.b16 %v105, %v104
  %v134 = vpack.c.b16 %v107, %v106
  %v135 = vpack.c.b16 %v109, %v108
  %v136 = vpack.c.b16 %v111, %v110
  %v137 = vpack.c.b16 %v113, %v112
  %v138 = vpack.c.b16 %v115, %v114
  %v139 = vpack.c.b16 %v117, %v116
  %v140 = vpack.c.b16 %v119, %v118
  %v141 = vpack.c.b16 %v121, %v120
  %v142 = vpack.c.b16 %v123, %v122
  %v143 = vpack.c.b16 %v125, %v124
  %v144 = vpack.c.b16 %v127, %v126
  %v145 = vpack.c.b16 %v129, %v128
  %162 = vmatprep.subr.bf16.mxu0 0
  %163 = vmatpush1.bf16.msra.mxu0 %v130
  %164 = vmatprep.subr.bf16.mxu0 0
  %165 = vmatpush1.bf16.msra.mxu0 %v131
  %166 = vmatprep.subr.bf16.mxu0 0
  %167 = vmatpush1.bf16.msra.mxu0 %v132
  %168 = vmatprep.subr.bf16.mxu0 0
  %169 = vmatpush1.bf16.msra.mxu0 %v133
  %170 = vmatprep.subr.bf16.mxu0 0
  %171 = vmatpush1.bf16.msra.mxu0 %v134
  %172 = vmatprep.subr.bf16.mxu0 0
  %173 = vmatpush1.bf16.msra.mxu0 %v135
  %174 = vmatprep.subr.bf16.mxu0 0
  %175 = vmatpush1.bf16.msra.mxu0 %v136
  %176 = vmatprep.subr.bf16.mxu0 0
  %177 = vmatpush1.bf16.msra.mxu0 %v137
  %178 = vmatprep.subr.bf16.mxu0 0
  %179 = vmatpush1.bf16.msra.mxu0 %v138
  %180 = vmatprep.subr.bf16.mxu0 0
  %181 = vmatpush1.bf16.msra.mxu0 %v139
  %182 = vmatprep.subr.bf16.mxu0 0
  %183 = vmatpush1.bf16.msra.mxu0 %v140
  %184 = vmatprep.subr.bf16.mxu0 0
  %185 = vmatpush1.bf16.msra.mxu0 %v141
  %186 = vmatprep.subr.bf16.mxu0 0
  %187 = vmatpush1.bf16.msra.mxu0 %v142
  %188 = vmatprep.subr.bf16.mxu0 0
  %189 = vmatpush1.bf16.msra.mxu0 %v143
  %190 = vmatprep.subr.bf16.mxu0 0
  %191 = vmatpush1.bf16.msra.mxu0 %v144
  %192 = vmatprep.subr.bf16.mxu0 0
  %193 = vmatpush1.bf16.msra.mxu0 %v145
  %194 = vmatprep.mubr.bf16.mxu0 %v63
  %195 = vmatmul.mubr.bf16.gmra.mrb[0].mxu0 %v62
  %v196 = vpop.f32.mrb[0].mxu0
  %v197 = vadd.f32 %v54, %v196
  %v198 = vpop.f32.mrb[0].mxu0
  %v199 = vpop.f32.mrb[0].mxu0
  %v200 = vadd.f32 %v54, %v199
  %v201 = vpop.f32.mrb[0].mxu0
  %202 = vdwg.mxu0
  %v203 = vmax.f32 %v197, 0.0
  %v204 = vmax.f32 %v200, 0.0
  %v205 = vpack.c.bf16 %v204, %v203
  %v207 = vunpack.c.l.b16 %v205
  %v208 = vunpack.c.h.b16 %v205
  %v209 = vpack.c.b16 %v207, %v207
  %v210 = vpack.c.b16 %v208, %v208
  %213 = vst [vmem:[%s3] sm:$0xf] %v209
  %214 = vst [vmem:[%s3 + $0x4] sm:$0xf] %v210
  // Predicated region
  $region14: #{r2d2_mlp_forward.19} parent=0 // pred_check
    _
  $region15: #{r2d2_mlp_forward.19} parent=0 // pred_check_branch
    %216 = sbr.rel (0) target = $region17
  $region16: #{r2d2_mlp_forward.19} parent=0 // pred_region
    _
  $region17: #{r2d2_mlp_forward.19} parent=0 // pred_fallthru
    _
  // Predicated region
  $region18: #{r2d2_mlp_forward.19} parent=0 // pred_check
    _
  $region19: #{r2d2_mlp_forward.19} parent=0 // pred_check_branch
    %218 = sbr.rel (0) target = $region21
  $region20: #{r2d2_mlp_forward.19} parent=0 // pred_region
    _
  $region21: #{r2d2_mlp_forward.19} parent=0 // pred_fallthru
    _

// kernel: r2d2_mlp_forward.21
$region0: #{r2d2_mlp_forward.21}
  #allocation0 [shape = 'u32[]', space=smem, size = 0x4, offset = 0x4, fixed_abs, tag = 'smem constant byte address 0x4 - core index']
  #allocation1 [shape = 'u32[144,128]{1,0:T(1,128)}', space=vmem, size = 0x12000, scoped, tag = 'internal scratch']
  %s0 = inlined_call_operand.vmem [shape: bf16[16,256], index: 0, kind: input, shape index: {}]
  %s1 = inlined_call_operand.vmem [shape: bf16[16,256], index: 1, kind: input, shape index: {}]
  %s2 = inlined_call_operand.vmem [shape: bf16[256,128], index: 2, kind: input, shape index: {}]
  %s3 = inlined_call_operand.vmem [shape: f32[1,128], index: 3, kind: input, shape index: {}]
  %s4 = inlined_call_operand.vmem [shape: bf16[256,128], index: 4, kind: input, shape index: {}]
  %s5 = inlined_call_operand.vmem [shape: f32[1,128], index: 5, kind: input, shape index: {}]
  %s6 = inlined_call_operand.vmem [shape: f32[16,128], index: 6, kind: output, shape index: {}]
  %s7 = sld [smem:[#allocation0]]
  $region34: #{r2d2_mlp_forward.21} parent=0
    _
  %s9 = ssub.s32 1, %s7
  %s10 = scalar_select 0, %s9, %s7
  // Predicated region
  $region2: #{r2d2_mlp_forward.21} parent=0 // pred_check
    _
  $region3: #{r2d2_mlp_forward.21} parent=0 // pred_check_branch
    %12 = sbr.rel (0) target = $region5
  $region4: #{r2d2_mlp_forward.21} parent=0 // pred_region
    _
  $region5: #{r2d2_mlp_forward.21} parent=0 // pred_fallthru
    _
  // Predicated region
  $region6: #{r2d2_mlp_forward.21} parent=0 // pred_check
    _
  $region7: #{r2d2_mlp_forward.21} parent=0 // pred_check_branch
    %14 = sbr.rel (0) target = $region9
  $region8: #{r2d2_mlp_forward.21} parent=0 // pred_region
    _
  $region9: #{r2d2_mlp_forward.21} parent=0 // pred_fallthru
    _
  // Predicated region
  $region10: #{r2d2_mlp_forward.21} parent=0 // pred_check
    _
  $region11: #{r2d2_mlp_forward.21} parent=0 // pred_check_branch
    %16 = sbr.rel (0) target = $region13
  $region12: #{r2d2_mlp_forward.21} parent=0 // pred_region
    _
  $region13: #{r2d2_mlp_forward.21} parent=0 // pred_fallthru
    _
  // Predicated region
  $region14: #{r2d2_mlp_forward.21} parent=0 // pred_check
    _
  $region15: #{r2d2_mlp_forward.21} parent=0 // pred_check_branch
    %18 = sbr.rel (0) target = $region17
  $region16: #{r2d2_mlp_forward.21} parent=0 // pred_region
    _
  $region17: #{r2d2_mlp_forward.21} parent=0 // pred_fallthru
    _
  // Predicated region
  $region18: #{r2d2_mlp_forward.21} parent=0 // pred_check
    _
  $region19: #{r2d2_mlp_forward.21} parent=0 // pred_check_branch
    %20 = sbr.rel (0) target = $region21
  $region20: #{r2d2_mlp_forward.21} parent=0 // pred_region
    _
  $region21: #{r2d2_mlp_forward.21} parent=0 // pred_fallthru
    _
  // Predicated region
  $region22: #{r2d2_mlp_forward.21} parent=0 // pred_check
    _
  $region23: #{r2d2_mlp_forward.21} parent=0 // pred_check_branch
    %22 = sbr.rel (0) target = $region25
  $region24: #{r2d2_mlp_forward.21} parent=0 // pred_region
    _
  $region25: #{r2d2_mlp_forward.21} parent=0 // pred_fallthru
    _
  %v24 = vld [vmem:[%s0] sm:$0xff]
  %v25 = vld [vmem:[%s0 + $0x8] sm:$0xff]
  %v26 = vld [vmem:[%s2] sm:$0xf]
  %v27 = vld [vmem:[%s2 + $0x4] sm:$0xf]
  %v28 = vld [vmem:[%s2 + $0x8] sm:$0xf]
  %v29 = vld [vmem:[%s2 + $0xc] sm:$0xf]
  %v30 = vld [vmem:[%s2 + $0x10] sm:$0xf]
  %v31 = vld [vmem:[%s2 + $0x14] sm:$0xf]
  %v32 = vld [vmem:[%s2 + $0x18] sm:$0xf]
  %v33 = vld [vmem:[%s2 + $0x1c] sm:$0xf]
  %v34 = vld [vmem:[%s2 + $0x20] sm:$0xf]
  %v35 = vld [vmem:[%s2 + $0x24] sm:$0xf]
  %v36 = vld [vmem:[%s2 + $0x28] sm:$0xf]
  %v37 = vld [vmem:[%s2 + $0x2c] sm:$0xf]
  %v38 = vld [vmem:[%s2 + $0x30] sm:$0xf]
  %v39 = vld [vmem:[%s2 + $0x34] sm:$0xf]
  %v40 = vld [vmem:[%s2 + $0x38] sm:$0xf]
  %v41 = vld [vmem:[%s2 + $0x3c] sm:$0xf]
  %v42 = vld [vmem:[%s2 + $0x40] sm:$0xf]
  %v43 = vld [vmem:[%s2 + $0x44] sm:$0xf]
  %v44 = vld [vmem:[%s2 + $0x48] sm:$0xf]
  %v45 = vld [vmem:[%s2 + $0x4c] sm:$0xf]
  %v46 = vld [vmem:[%s2 + $0x50] sm:$0xf]
  %v47 = vld [vmem:[%s2 + $0x54] sm:$0xf]
  %v48 = vld [vmem:[%s2 + $0x58] sm:$0xf]
  %v49 = vld [vmem:[%s2 + $0x5c] sm:$0xf]
  %v50 = vld [vmem:[%s2 + $0x60] sm:$0xf]
  %v51 = vld [vmem:[%s2 + $0x64] sm:$0xf]
  %v52 = vld [vmem:[%s2 + $0x68] sm:$0xf]
  %v53 = vld [vmem:[%s2 + $0x6c] sm:$0xf]
  %v54 = vld [vmem:[%s2 + $0x70] sm:$0xf]
  %v55 = vld [vmem:[%s2 + $0x74] sm:$0xf]
  %v56 = vld [vmem:[%s2 + $0x78] sm:$0xf]
  %v57 = vld [vmem:[%s2 + $0x7c] sm:$0xf]
  %v58 = vld [vmem:[%s3] sm:$0x1]
  %v60 = vlaneseq
  %v61 = vshrl.u32 %v60, 7
  %v62 = vsub.s32 0, %v61
  %v63 = vrot.slane %v58, %v62
  %v67 = vunpack.c.l.b16 %v24
  %v68 = vunpack.c.h.b16 %v24
  %v69 = vunpack.c.l.b16 %v25
  %v70 = vunpack.c.h.b16 %v25
  %v71 = vpack.c.b16 %v69, %v67
  %v72 = vpack.c.b16 %v70, %v68
  %v107 = vunpack.c.l.b16 %v26
  %v108 = vunpack.c.l.b16 %v27
  %v109 = vunpack.c.l.b16 %v28
  %v110 = vunpack.c.l.b16 %v29
  %v111 = vunpack.c.l.b16 %v30
  %v112 = vunpack.c.l.b16 %v31
  %v113 = vunpack.c.l.b16 %v32
  %v114 = vunpack.c.l.b16 %v33
  %v115 = vunpack.c.l.b16 %v34
  %v116 = vunpack.c.l.b16 %v35
  %v117 = vunpack.c.l.b16 %v36
  %v118 = vunpack.c.l.b16 %v37
  %v119 = vunpack.c.l.b16 %v38
  %v120 = vunpack.c.l.b16 %v39
  %v121 = vunpack.c.l.b16 %v40
  %v122 = vunpack.c.l.b16 %v41
  %v123 = vunpack.c.l.b16 %v42
  %v124 = vunpack.c.l.b16 %v43
  %v125 = vunpack.c.l.b16 %v44
  %v126 = vunpack.c.l.b16 %v45
  %v127 = vunpack.c.l.b16 %v46
  %v128 = vunpack.c.l.b16 %v47
  %v129 = vunpack.c.l.b16 %v48
  %v130 = vunpack.c.l.b16 %v49
  %v131 = vunpack.c.l.b16 %v50
  %v132 = vunpack.c.l.b16 %v51
  %v133 = vunpack.c.l.b16 %v52
  %v134 = vunpack.c.l.b16 %v53
  %v135 = vunpack.c.l.b16 %v54
  %v136 = vunpack.c.l.b16 %v55
  %v137 = vunpack.c.l.b16 %v56
  %v138 = vunpack.c.l.b16 %v57
  %v139 = vpack.c.b16 %v108, %v107
  %v140 = vpack.c.b16 %v110, %v109
  %v141 = vpack.c.b16 %v112, %v111
  %v142 = vpack.c.b16 %v114, %v113
  %v143 = vpack.c.b16 %v116, %v115
  %v144 = vpack.c.b16 %v118, %v117
  %v145 = vpack.c.b16 %v120, %v119
  %v146 = vpack.c.b16 %v122, %v121
  %v147 = vpack.c.b16 %v124, %v123
  %v148 = vpack.c.b16 %v126, %v125
  %v149 = vpack.c.b16 %v128, %v127
  %v150 = vpack.c.b16 %v130, %v129
  %v151 = vpack.c.b16 %v132, %v131
  %v152 = vpack.c.b16 %v134, %v133
  %v153 = vpack.c.b16 %v136, %v135
  %v154 = vpack.c.b16 %v138, %v137
  %171 = vmatprep.subr.bf16.mxu0 0
  %172 = vmatpush1.bf16.msra.mxu0 %v139
  %173 = vmatprep.subr.bf16.mxu0 0
  %174 = vmatpush1.bf16.msra.mxu0 %v140
  %175 = vmatprep.subr.bf16.mxu0 0
  %176 = vmatpush1.bf16.msra.mxu0 %v141
  %177 = vmatprep.subr.bf16.mxu0 0
  %178 = vmatpush1.bf16.msra.mxu0 %v142
  %179 = vmatprep.subr.bf16.mxu0 0
  %180 = vmatpush1.bf16.msra.mxu0 %v143
  %181 = vmatprep.subr.bf16.mxu0 0
  %182 = vmatpush1.bf16.msra.mxu0 %v144
  %183 = vmatprep.subr.bf16.mxu0 0
  %184 = vmatpush1.bf16.msra.mxu0 %v145
  %185 = vmatprep.subr.bf16.mxu0 0
  %186 = vmatpush1.bf16.msra.mxu0 %v146
  %187 = vmatprep.subr.bf16.mxu0 0
  %188 = vmatpush1.bf16.msra.mxu0 %v147
  %189 = vmatprep.subr.bf16.mxu0 0
  %190 = vmatpush1.bf16.msra.mxu0 %v148
  %191 = vmatprep.subr.bf16.mxu0 0
  %192 = vmatpush1.bf16.msra.mxu0 %v149
  %193 = vmatprep.subr.bf16.mxu0 0
  %194 = vmatpush1.bf16.msra.mxu0 %v150
  %195 = vmatprep.subr.bf16.mxu0 0
  %196 = vmatpush1.bf16.msra.mxu0 %v151
  %197 = vmatprep.subr.bf16.mxu0 0
  %198 = vmatpush1.bf16.msra.mxu0 %v152
  %199 = vmatprep.subr.bf16.mxu0 0
  %200 = vmatpush1.bf16.msra.mxu0 %v153
  %201 = vmatprep.subr.bf16.mxu0 0
  %202 = vmatpush1.bf16.msra.mxu0 %v154
  %203 = vmatprep.mubr.bf16.mxu0 %v72
  %204 = vmatmul.mubr.bf16.gmra.mrb[0].mxu0 %v71
  %v205 = vpop.f32.mrb[0].mxu0
  %v206 = vadd.f32 %v63, %v205
  %v207 = vpop.f32.mrb[0].mxu0
  %v208 = vpop.f32.mrb[0].mxu0
  %v209 = vadd.f32 %v63, %v208
  %v210 = vpop.f32.mrb[0].mxu0
  %211 = vdwg.mxu0
  %v212 = vld [vmem:[%s1] sm:$0xff]
  %v213 = vld [vmem:[%s1 + $0x8] sm:$0xff]
  %v214 = vld [vmem:[%s4] sm:$0xf]
  %v215 = vld [vmem:[%s4 + $0x4] sm:$0xf]
  %v216 = vld [vmem:[%s4 + $0x8] sm:$0xf]
  %v217 = vld [vmem:[%s4 + $0xc] sm:$0xf]
  %v218 = vld [vmem:[%s4 + $0x10] sm:$0xf]
  %v219 = vld [vmem:[%s4 + $0x14] sm:$0xf]
  %v220 = vld [vmem:[%s4 + $0x18] sm:$0xf]
  %v221 = vld [vmem:[%s4 + $0x1c] sm:$0xf]
  %v222 = vld [vmem:[%s4 + $0x20] sm:$0xf]
  %v223 = vld [vmem:[%s4 + $0x24] sm:$0xf]
  %v224 = vld [vmem:[%s4 + $0x28] sm:$0xf]
  %v225 = vld [vmem:[%s4 + $0x2c] sm:$0xf]
  %v226 = vld [vmem:[%s4 + $0x30] sm:$0xf]
  %v227 = vld [vmem:[%s4 + $0x34] sm:$0xf]
  %v228 = vld [vmem:[%s4 + $0x38] sm:$0xf]
  %v229 = vld [vmem:[%s4 + $0x3c] sm:$0xf]
  %v230 = vld [vmem:[%s4 + $0x40] sm:$0xf]
  %v231 = vld [vmem:[%s4 + $0x44] sm:$0xf]
  %v232 = vld [vmem:[%s4 + $0x48] sm:$0xf]
  %v233 = vld [vmem:[%s4 + $0x4c] sm:$0xf]
  %v234 = vld [vmem:[%s4 + $0x50] sm:$0xf]
  %v235 = vld [vmem:[%s4 + $0x54] sm:$0xf]
  %v236 = vld [vmem:[%s4 + $0x58] sm:$0xf]
  %v237 = vld [vmem:[%s4 + $0x5c] sm:$0xf]
  %v238 = vld [vmem:[%s4 + $0x60] sm:$0xf]
  %v239 = vld [vmem:[%s4 + $0x64] sm:$0xf]
  %v240 = vld [vmem:[%s4 + $0x68] sm:$0xf]
  %v241 = vld [vmem:[%s4 + $0x6c] sm:$0xf]
  %v242 = vld [vmem:[%s4 + $0x70] sm:$0xf]
  %v243 = vld [vmem:[%s4 + $0x74] sm:$0xf]
  %v244 = vld [vmem:[%s4 + $0x78] sm:$0xf]
  %v245 = vld [vmem:[%s4 + $0x7c] sm:$0xf]
  %v246 = vld [vmem:[%s5] sm:$0x1]
  %v248 = vlaneseq
  %v249 = vshrl.u32 %v248, 7
  %v250 = vsub.s32 0, %v249
  %v251 = vrot.slane %v246, %v250
  %v255 = vunpack.c.l.b16 %v212
  %v256 = vunpack.c.h.b16 %v212
  %v257 = vunpack.c.l.b16 %v213
  %v258 = vunpack.c.h.b16 %v213
  %v259 = vpack.c.b16 %v257, %v255
  %v260 = vpack.c.b16 %v258, %v256
  %v295 = vunpack.c.l.b16 %v214
  %v296 = vunpack.c.l.b16 %v215
  %v297 = vunpack.c.l.b16 %v216
  %v298 = vunpack.c.l.b16 %v217
  %v299 = vunpack.c.l.b16 %v218
  %v300 = vunpack.c.l.b16 %v219
  %v301 = vunpack.c.l.b16 %v220
  %v302 = vunpack.c.l.b16 %v221
  %v303 = vunpack.c.l.b16 %v222
  %v304 = vunpack.c.l.b16 %v223
  %v305 = vunpack.c.l.b16 %v224
  %v306 = vunpack.c.l.b16 %v225
  %v307 = vunpack.c.l.b16 %v226
  %v308 = vunpack.c.l.b16 %v227
  %v309 = vunpack.c.l.b16 %v228
  %v310 = vunpack.c.l.b16 %v229
  %v311 = vunpack.c.l.b16 %v230
  %v312 = vunpack.c.l.b16 %v231
  %v313 = vunpack.c.l.b16 %v232
  %v314 = vunpack.c.l.b16 %v233
  %v315 = vunpack.c.l.b16 %v234
  %v316 = vunpack.c.l.b16 %v235
  %v317 = vunpack.c.l.b16 %v236
  %v318 = vunpack.c.l.b16 %v237
  %v319 = vunpack.c.l.b16 %v238
  %v320 = vunpack.c.l.b16 %v239
  %v321 = vunpack.c.l.b16 %v240
  %v322 = vunpack.c.l.b16 %v241
  %v323 = vunpack.c.l.b16 %v242
  %v324 = vunpack.c.l.b16 %v243
  %v325 = vunpack.c.l.b16 %v244
  %v326 = vunpack.c.l.b16 %v245
  %v327 = vpack.c.b16 %v296, %v295
  %v328 = vpack.c.b16 %v298, %v297
  %v329 = vpack.c.b16 %v300, %v299
  %v330 = vpack.c.b16 %v302, %v301
  %v331 = vpack.c.b16 %v304, %v303
  %v332 = vpack.c.b16 %v306, %v305
  %v333 = vpack.c.b16 %v308, %v307
  %v334 = vpack.c.b16 %v310, %v309
  %v335 = vpack.c.b16 %v312, %v311
  %v336 = vpack.c.b16 %v314, %v313
  %v337 = vpack.c.b16 %v316, %v315
  %v338 = vpack.c.b16 %v318, %v317
  %v339 = vpack.c.b16 %v320, %v319
  %v340 = vpack.c.b16 %v322, %v321
  %v341 = vpack.c.b16 %v324, %v323
  %v342 = vpack.c.b16 %v326, %v325
  %359 = vmatprep.subr.bf16.mxu0 0
  %360 = vmatpush1.bf16.msra.mxu0 %v327
  %361 = vmatprep.subr.bf16.mxu0 0
  %362 = vmatpush1.bf16.msra.mxu0 %v328
  %363 = vmatprep.subr.bf16.mxu0 0
  %364 = vmatpush1.bf16.msra.mxu0 %v329
  %365 = vmatprep.subr.bf16.mxu0 0
  %366 = vmatpush1.bf16.msra.mxu0 %v330
  %367 = vmatprep.subr.bf16.mxu0 0
  %368 = vmatpush1.bf16.msra.mxu0 %v331
  %369 = vmatprep.subr.bf16.mxu0 0
  %370 = vmatpush1.bf16.msra.mxu0 %v332
  %371 = vmatprep.subr.bf16.mxu0 0
  %372 = vmatpush1.bf16.msra.mxu0 %v333
  %373 = vmatprep.subr.bf16.mxu0 0
  %374 = vmatpush1.bf16.msra.mxu0 %v334
  %375 = vmatprep.subr.bf16.mxu0 0
  %376 = vmatpush1.bf16.msra.mxu0 %v335
  %377 = vmatprep.subr.bf16.mxu0 0
  %378 = vmatpush1.bf16.msra.mxu0 %v336
  %379 = vmatprep.subr.bf16.mxu0 0
  %380 = vmatpush1.bf16.msra.mxu0 %v337
  %381 = vmatprep.subr.bf16.mxu0 0
  %382 = vmatpush1.bf16.msra.mxu0 %v338
  %383 = vmatprep.subr.bf16.mxu0 0
  %384 = vmatpush1.bf16.msra.mxu0 %v339
  %385 = vmatprep.subr.bf16.mxu0 0
  %386 = vmatpush1.bf16.msra.mxu0 %v340
  %387 = vmatprep.subr.bf16.mxu0 0
  %388 = vmatpush1.bf16.msra.mxu0 %v341
  %389 = vmatprep.subr.bf16.mxu0 0
  %390 = vmatpush1.bf16.msra.mxu0 %v342
  %391 = vmatprep.mubr.bf16.mxu0 %v260
  %392 = vmatmul.mubr.bf16.gmra.mrb[0].mxu0 %v259
  %v393 = vpop.f32.mrb[0].mxu0
  %v394 = vadd.f32 %v251, %v393
  %v395 = vpop.f32.mrb[0].mxu0
  %v396 = vpop.f32.mrb[0].mxu0
  %v397 = vadd.f32 %v251, %v396
  %v398 = vpop.f32.mrb[0].mxu0
  %399 = vdwg.mxu0
  %400 = vadd.xlane.f32.xlu0 %v206
  %v401 = vpop.xlane.xlu0 %400
  %402 = vadd.xlane.f32.xlu0 %v209
  %v403 = vpop.xlane.xlu0 %402
  %v404 = vmul.f32 %v401, 0.16666667
  %v405 = vmul.f32 %v403, 0.16666667
  %406 = vadd.xlane.f32.xlu0 %v394
  %v407 = vpop.xlane.xlu0 %406
  %408 = vadd.xlane.f32.xlu0 %v397
  %v409 = vpop.xlane.xlu0 %408
  %v410 = vsub.f32 %v206, %v404
  %v411 = vsub.f32 %v209, %v405
  %v412 = vadd.f32 %v407, %v410
  %v413 = vadd.f32 %v409, %v411
  %414 = vst [vmem:[%s6] sm:$0xff] %v412
  %415 = vst [vmem:[%s6 + $0x8] sm:$0xff] %v413
  // Predicated region
  $region26: #{r2d2_mlp_forward.21} parent=0 // pred_check
    _
  $region27: #{r2d2_mlp_forward.21} parent=0 // pred_check_branch
    %417 = sbr.rel (0) target = $region29
  $region28: #{r2d2_mlp_forward.21} parent=0 // pred_region
    _
  $region29: #{r2d2_mlp_forward.21} parent=0 // pred_fallthru
    _
  // Predicated region
  $region30: #{r2d2_mlp_forward.21} parent=0 // pred_check
    _
  $region31: #{r2d2_mlp_forward.21} parent=0 // pred_check_branch
    %419 = sbr.rel (0) target = $region33
  $region32: #{r2d2_mlp_forward.21} parent=0 // pred_region
    _
  $region33: #{r2d2_mlp_forward.21} parent=0 // pred_fallthru
    _

</llo_original>
